<compile_context>
chip_gen: v5e
topology: v5e:2x2
jax: 0.10.0
libtpu: 0.0.40
codegen_flags: <defaults>
</compile_context>

<pallas_src>
import math
import jax
import jax.numpy as jnp
from jax import lax
from jax.experimental import pallas as pl
from jax.experimental.pallas import tpu as pltpu


def _make_fused_kernel(n_head, d_k, d_v, inv_temper):
    def kernel(q_ref, k_ref, v_ref, wq_ref, wk_ref, wv_ref,
               pw_ref, pb_ref, out_ref, att_ref, acc_ref):
        # q_ref: (tq, D) f32 ; k_ref/v_ref: (Lk, D) f32
        # wq_ref/wk_ref: (D, H*d_k) bf16 ; wv_ref: (D, H*d_v) bf16
        # pw_ref: (H*d_v, D) bf16 ; pb_ref: (1, D) f32
        # out_ref: (tq, D) ; att_ref: (H, tq, Lk) ; acc_ref: (tq, D) f32 scratch
        q = q_ref[...].astype(jnp.bfloat16)
        k = k_ref[...].astype(jnp.bfloat16)
        v = v_ref[...].astype(jnp.bfloat16)

        # One wide projection matmul per operand covering ALL heads (bf16 in, f32 acc).
        # Scale once on Q here instead of on every (tq, Lk) score block.
        qh = jnp.dot(q, wq_ref[...], preferred_element_type=jnp.float32) * inv_temper
        kh = jnp.dot(k, wk_ref[...], preferred_element_type=jnp.float32)
        vh = jnp.dot(v, wv_ref[...], preferred_element_type=jnp.float32)
        qh = qh.astype(jnp.bfloat16)
        kh = kh.astype(jnp.bfloat16)
        vh = vh.astype(jnp.bfloat16)
        pw = pw_ref[...]

        acc_ref[...] = jnp.zeros_like(acc_ref)

        # Static unroll over heads: slice offsets stay compile-time constants (clean
        # lane/sublane slices), and each head's context is folded straight into the
        # output-projection accumulator so only one head's (tq, Lk) block is live.
        for h in range(n_head):
            qh_h = qh[:, h * d_k:(h + 1) * d_k]   # (tq, d_k)
            kh_h = kh[:, h * d_k:(h + 1) * d_k]   # (Lk, d_k)
            vh_h = vh[:, h * d_v:(h + 1) * d_v]   # (Lk, d_v)

            # q @ k^T contracting the last axes (no materialized transpose).
            s = lax.dot_general(qh_h, kh_h, (((1,), (1,)), ((), ())),
                                preferred_element_type=jnp.float32)
            e = jnp.exp(s - jnp.max(s, axis=-1, keepdims=True))
            inv_den = pl.reciprocal(jnp.sum(e, axis=-1, keepdims=True), approx=True)
            att = e * inv_den
            att_ref[h] = att.astype(att_ref.dtype)

            ctx_h = jnp.dot(att.astype(jnp.bfloat16), vh_h,
                            preferred_element_type=jnp.float32)     # (tq, d_v)
            # sum_h ctx_h @ Wp[h*d_v:(h+1)*d_v, :] == concat_h(ctx_h) @ Wp
            acc_ref[...] += jnp.dot(ctx_h.astype(jnp.bfloat16),
                                    pw[h * d_v:(h + 1) * d_v, :],
                                    preferred_element_type=jnp.float32)

        out_ref[...] = (acc_ref[...] + pb_ref[...]).astype(out_ref.dtype)

    return kernel


def multihead_attention(q, k, v, w_qs, w_ks, w_vs, proj_w, proj_b, *,
                        attn_dtype=jnp.float32):
    """Pallas implementation of MultiheadAttention.forward (eval mode, mask=None).

    q, k, v : (B, L, d_model)
    w_qs, w_ks : (H, d_model, d_k); w_vs : (H, d_model, d_v)
    proj_w : (d_model, H*d_v)   (torch Linear weight layout)
    proj_b : (d_model,)
    Returns: outputs (B, Lq, d_model), attns (H*B, Lq, Lk)
    """
    B, Lq, D = q.shape
    _, Lk, _ = k.shape
    H, _, d_k = w_qs.shape
    d_v = w_vs.shape[-1]
    inv_temper = 1.0 / math.sqrt(D)      # module uses temper = sqrt(d_model)

    tile_q = Lq if Lq <= 128 else 128
    n_qt = pl.cdiv(Lq, tile_q)

    # Concatenate per-head weights head-major along the output-feature axis so the
    # kernel does one wide matmul per operand; cast to bf16 (MXU operand dtype).
    wq_cat = w_qs.transpose(1, 0, 2).reshape(D, H * d_k).astype(jnp.bfloat16)
    wk_cat = w_ks.transpose(1, 0, 2).reshape(D, H * d_k).astype(jnp.bfloat16)
    wv_cat = w_vs.transpose(1, 0, 2).reshape(D, H * d_v).astype(jnp.bfloat16)
    pw_t = proj_w.T.astype(jnp.bfloat16)     # (H*d_v, d_model)
    pb_2d = proj_b.reshape(1, D)             # keep bias f32

    out, att4 = pl.pallas_call(
        _make_fused_kernel(H, d_k, d_v, inv_temper),
        out_shape=(
            jax.ShapeDtypeStruct((B, Lq, D), jnp.float32),
            jax.ShapeDtypeStruct((H, B, Lq, Lk), attn_dtype),
        ),
        grid_spec=pltpu.PrefetchScalarGridSpec(
            num_scalar_prefetch=0,
            grid=(B, n_qt),
            in_specs=[
                pl.BlockSpec((pl.Squeezed(), tile_q, D), lambda b, t: (b, t, 0)),  # q
                pl.BlockSpec((pl.Squeezed(), Lk, D), lambda b, t: (b, 0, 0)),      # k
                pl.BlockSpec((pl.Squeezed(), Lk, D), lambda b, t: (b, 0, 0)),      # v
                pl.BlockSpec((D, H * d_k), lambda b, t: (0, 0)),   # w_qs (fused, bf16)
                pl.BlockSpec((D, H * d_k), lambda b, t: (0, 0)),   # w_ks (fused, bf16)
                pl.BlockSpec((D, H * d_v), lambda b, t: (0, 0)),   # w_vs (fused, bf16)
                pl.BlockSpec((H * d_v, D), lambda b, t: (0, 0)),   # proj W^T (bf16)
                pl.BlockSpec((1, D), lambda b, t: (0, 0)),         # proj bias (f32)
            ],
            out_specs=[
                pl.BlockSpec((pl.Squeezed(), tile_q, D), lambda b, t: (b, t, 0)),
                pl.BlockSpec((H, pl.Squeezed(), tile_q, Lk), lambda b, t: (0, b, t, 0)),
            ],
            scratch_shapes=[pltpu.VMEM((tile_q, D), jnp.float32)],
        ),
        compiler_params=pltpu.CompilerParams(
            dimension_semantics=("parallel", "parallel")),
    )(q, k, v, wq_cat, wk_cat, wv_cat, pw_t, pb_2d)

    # (H, B, Lq, Lk) -> (H*B, Lq, Lk): index n = h*B + b, matching torch's
    # head-repeated batch stacking. Pure reshape (no transpose / data movement).
    attns = att4.reshape(H * B, Lq, Lk)
    return out, attns


def reference_jax(q, k, v, w_qs, w_ks, w_vs, proj_w, proj_b):
    """Pure-JAX f32 reference mirroring the PyTorch forward (eval mode, mask=None)."""
    B, Lq, D = q.shape
    H, _, d_k = w_qs.shape
    d_v = w_vs.shape[-1]
    temper = math.sqrt(D)

    qs = jnp.einsum('bld,hdk->hblk', q, w_qs).reshape(H * B, Lq, d_k)
    ks = jnp.einsum('bld,hdk->hblk', k, w_ks).reshape(H * B, -1, d_k)
    vs = jnp.einsum('bld,hdk->hblk', v, w_vs).reshape(H * B, -1, d_v)

    att = jnp.einsum('nqd,nkd->nqk', qs, ks) / temper
    att = jax.nn.softmax(att, axis=-1)
    out = jnp.einsum('nqk,nkd->nqd', att, vs)                       # (H*B, Lq, d_v)
    cat = out.reshape(H, B, Lq, d_v).transpose(1, 2, 0, 3).reshape(B, Lq, H * d_v)
    proj = cat @ proj_w.T + proj_b
    return proj, att


if __name__ == "__main__":
    # Small shapes implied by the module: batch=2, seq=8, d_model=32, n_head=4, d_k=d_v=8
    B, L, d_model = 2, 8, 32
    n_head, d_k, d_v = 4, 8, 8

    key = jax.random.PRNGKey(0)
    ks = jax.random.split(key, 8)

    q = jax.random.normal(ks[0], (B, L, d_model), dtype=jnp.float32)
    k = jax.random.normal(ks[1], (B, L, d_model), dtype=jnp.float32)
    v = jax.random.normal(ks[2], (B, L, d_model), dtype=jnp.float32)

    # xavier_normal for the per-head projection weights: std = sqrt(2/(fan_in+fan_out))
    std_qk = math.sqrt(2.0 / (d_model + d_k))
    std_v = math.sqrt(2.0 / (d_model + d_v))
    w_qs = std_qk * jax.random.normal(ks[3], (n_head, d_model, d_k), dtype=jnp.float32)
    w_ks = std_qk * jax.random.normal(ks[4], (n_head, d_model, d_k), dtype=jnp.float32)
    w_vs = std_v * jax.random.normal(ks[5], (n_head, d_model, d_v), dtype=jnp.float32)

    # nn.Linear(n_head*d_v, d_model) default init: U(-1/sqrt(in), 1/sqrt(in))
    bound = 1.0 / math.sqrt(n_head * d_v)
    proj_w = jax.random.uniform(ks[6], (d_model, n_head * d_v), jnp.float32,
                                minval=-bound, maxval=bound)
    proj_b = jax.random.uniform(ks[7], (d_model,), jnp.float32,
                                minval=-bound, maxval=bound)

    out, attns = multihead_attention(q, k, v, w_qs, w_ks, w_vs, proj_w, proj_b)
    out = jax.block_until_ready(out)
    attns = jax.block_until_ready(attns)

    ref_out, ref_att = reference_jax(q, k, v, w_qs, w_ks, w_vs, proj_w, proj_b)
    assert out.shape == (B, L, d_model)
    assert attns.shape == (n_head * B, L, L)
    # bf16 MXU operands (f32 accumulation) + approx reciprocal -> relaxed tolerances
    # vs. the f32 reference.
    assert jnp.allclose(out, ref_out, atol=5e-2, rtol=5e-2), \
        float(jnp.max(jnp.abs(out - ref_out)))
    assert jnp.allclose(attns, ref_att, atol=2e-2, rtol=2e-2), \
        float(jnp.max(jnp.abs(attns - ref_att)))

    print("KERNEL_OK")
</pallas_src>

<mosaic_0001>
module attributes {stable_mosaic.version = 11 : i64} {
  func.func @kernel(%arg0: i32, %arg1: i32, %arg2: memref<1x8x32xf32, #tpu.memory_space<vmem>>, %arg3: memref<1x8x32xf32, #tpu.memory_space<vmem>>, %arg4: memref<1x8x32xf32, #tpu.memory_space<vmem>>, %arg5: memref<32x32xbf16, #tpu.memory_space<vmem>>, %arg6: memref<32x32xbf16, #tpu.memory_space<vmem>>, %arg7: memref<32x32xbf16, #tpu.memory_space<vmem>>, %arg8: memref<32x32xbf16, #tpu.memory_space<vmem>>, %arg9: memref<1x32xf32, #tpu.memory_space<vmem>>, %arg10: memref<1x8x32xf32, #tpu.memory_space<vmem>>, %arg11: memref<4x1x8x8xf32, #tpu.memory_space<vmem>>, %arg12: memref<8x32xf32, #tpu.memory_space<vmem>>) attributes {dimension_semantics = [#tpu.dimension_semantics<parallel>, #tpu.dimension_semantics<parallel>], iteration_bounds = array<i64: 2, 1>, scalar_prefetch = 0 : i64, scratch_operands = 1 : i64, tpu.core_type = #tpu.core_type<tc>, window_params = [{transform_indices = @transform_0, window_bounds = array<i64: 1, 8, 32>}, {transform_indices = @transform_1, window_bounds = array<i64: 1, 8, 32>}, {transform_indices = @transform_2, window_bounds = array<i64: 1, 8, 32>}, {pipeline_mode = #tpu.pipeline_mode<synchronous>, transform_indices = @transform_3, window_bounds = array<i64: 32, 32>}, {pipeline_mode = #tpu.pipeline_mode<synchronous>, transform_indices = @transform_4, window_bounds = array<i64: 32, 32>}, {pipeline_mode = #tpu.pipeline_mode<synchronous>, transform_indices = @transform_5, window_bounds = array<i64: 32, 32>}, {pipeline_mode = #tpu.pipeline_mode<synchronous>, transform_indices = @transform_6, window_bounds = array<i64: 32, 32>}, {pipeline_mode = #tpu.pipeline_mode<synchronous>, transform_indices = @transform_7, window_bounds = array<i64: 1, 32>}, {transform_indices = @transform_8, window_bounds = array<i64: 1, 8, 32>}, {transform_indices = @transform_9, window_bounds = array<i64: 4, 1, 8, 8>}]} {
    %c0 = arith.constant 0 : index
    %c0_0 = arith.constant 0 : index
    %c0_1 = arith.constant 0 : index
    %0 = vector.load %arg2[%c0, %c0_0, %c0_1] : memref<1x8x32xf32, #tpu.memory_space<vmem>>, vector<1x8x32xf32>
    %1 = vector.shape_cast %0 : vector<1x8x32xf32> to vector<8x32xf32>
    %2 = arith.truncf %1 : vector<8x32xf32> to vector<8x32xbf16>
    %c0_2 = arith.constant 0 : index
    %c0_3 = arith.constant 0 : index
    %c0_4 = arith.constant 0 : index
    %3 = vector.load %arg3[%c0_2, %c0_3, %c0_4] : memref<1x8x32xf32, #tpu.memory_space<vmem>>, vector<1x8x32xf32>
    %4 = vector.shape_cast %3 : vector<1x8x32xf32> to vector<8x32xf32>
    %5 = arith.truncf %4 : vector<8x32xf32> to vector<8x32xbf16>
    %c0_5 = arith.constant 0 : index
    %c0_6 = arith.constant 0 : index
    %c0_7 = arith.constant 0 : index
    %6 = vector.load %arg4[%c0_5, %c0_6, %c0_7] : memref<1x8x32xf32, #tpu.memory_space<vmem>>, vector<1x8x32xf32>
    %7 = vector.shape_cast %6 : vector<1x8x32xf32> to vector<8x32xf32>
    %8 = arith.truncf %7 : vector<8x32xf32> to vector<8x32xbf16>
    %c0_8 = arith.constant 0 : index
    %c0_9 = arith.constant 0 : index
    %9 = vector.load %arg5[%c0_8, %c0_9] : memref<32x32xbf16, #tpu.memory_space<vmem>>, vector<32x32xbf16>
    %cst = arith.constant dense<0.000000e+00> : vector<8x32xf32>
    %10 = tpu.matmul %2, %9, %cst {dimension_numbers = #tpu.dot_dimension_numbers<[1], [0], [0], [1], [0, 0, 1, 1], [], []>} : vector<8x32xbf16>, vector<32x32xbf16>, vector<8x32xf32> -> vector<8x32xf32>
    %cst_10 = arith.constant 0.176776692 : f32
    %11 = vector.broadcast %cst_10 : f32 to vector<8x32xf32>
    %12 = arith.mulf %10, %11 : vector<8x32xf32>
    %c0_11 = arith.constant 0 : index
    %c0_12 = arith.constant 0 : index
    %13 = vector.load %arg6[%c0_11, %c0_12] : memref<32x32xbf16, #tpu.memory_space<vmem>>, vector<32x32xbf16>
    %cst_13 = arith.constant dense<0.000000e+00> : vector<8x32xf32>
    %14 = tpu.matmul %5, %13, %cst_13 {dimension_numbers = #tpu.dot_dimension_numbers<[1], [0], [0], [1], [0, 0, 1, 1], [], []>} : vector<8x32xbf16>, vector<32x32xbf16>, vector<8x32xf32> -> vector<8x32xf32>
    %c0_14 = arith.constant 0 : index
    %c0_15 = arith.constant 0 : index
    %15 = vector.load %arg7[%c0_14, %c0_15] : memref<32x32xbf16, #tpu.memory_space<vmem>>, vector<32x32xbf16>
    %cst_16 = arith.constant dense<0.000000e+00> : vector<8x32xf32>
    %16 = tpu.matmul %8, %15, %cst_16 {dimension_numbers = #tpu.dot_dimension_numbers<[1], [0], [0], [1], [0, 0, 1, 1], [], []>} : vector<8x32xbf16>, vector<32x32xbf16>, vector<8x32xf32> -> vector<8x32xf32>
    %17 = arith.truncf %12 : vector<8x32xf32> to vector<8x32xbf16>
    %18 = arith.truncf %14 : vector<8x32xf32> to vector<8x32xbf16>
    %19 = arith.truncf %16 : vector<8x32xf32> to vector<8x32xbf16>
    %c0_17 = arith.constant 0 : index
    %c0_18 = arith.constant 0 : index
    %20 = vector.load %arg8[%c0_17, %c0_18] : memref<32x32xbf16, #tpu.memory_space<vmem>>, vector<32x32xbf16>
    %cst_19 = arith.constant 0.000000e+00 : f32
    %21 = vector.broadcast %cst_19 : f32 to vector<8x32xf32>
    %c0_20 = arith.constant 0 : index
    %c0_21 = arith.constant 0 : index
    %22 = vector.load %arg12[%c0_20, %c0_21] : memref<8x32xf32, #tpu.memory_space<vmem>>, vector<8x32xf32>
    tpu.vector_store %arg12[%c0_20, %c0_21], %21 {strides = array<i32>} : memref<8x32xf32, #tpu.memory_space<vmem>>, vector<8x32xf32>,
    %23 = vector.extract_strided_slice %17 {offsets = [0, 0], sizes = [8, 8], strides = [1, 1]} : vector<8x32xbf16> to vector<8x8xbf16>
    %24 = vector.extract_strided_slice %18 {offsets = [0, 0], sizes = [8, 8], strides = [1, 1]} : vector<8x32xbf16> to vector<8x8xbf16>
    %25 = vector.extract_strided_slice %19 {offsets = [0, 0], sizes = [8, 8], strides = [1, 1]} : vector<8x32xbf16> to vector<8x8xbf16>
    %cst_22 = arith.constant dense<0.000000e+00> : vector<8x8xf32>
    %26 = tpu.matmul %23, %24, %cst_22 {dimension_numbers = #tpu.dot_dimension_numbers<[1], [1], [0], [0], [0, 0, 1, 0], [], []>} : vector<8x8xbf16>, vector<8x8xbf16>, vector<8x8xf32> -> vector<8x8xf32>
    %cst_23 = arith.constant dense<0xFF800000> : vector<8xf32>
    %27 = vector.multi_reduction <maximumf>, %26, %cst_23 [1] : vector<8x8xf32> to vector<8xf32>
    %28 = vector.shape_cast %27 : vector<8xf32> to vector<8x1xf32>
    %29 = vector.broadcast %28 : vector<8x1xf32> to vector<8x8xf32>
    %30 = arith.subf %26, %29 : vector<8x8xf32>
    %31 = math.exp %30 : vector<8x8xf32>
    %cst_24 = arith.constant dense<0.000000e+00> : vector<8xf32>
    %32 = vector.multi_reduction <add>, %31, %cst_24 [1] : vector<8x8xf32> to vector<8xf32>
    %33 = vector.shape_cast %32 : vector<8xf32> to vector<8x1xf32>
    %34 = tpu.reciprocal %33 {approx = true} : vector<8x1xf32> -> vector<8x1xf32>
    %35 = vector.broadcast %34 : vector<8x1xf32> to vector<8x8xf32>
    %36 = arith.mulf %31, %35 : vector<8x8xf32>
    %c0_25 = arith.constant 0 : index
    %c0_26 = arith.constant 0 : index
    %c0_27 = arith.constant 0 : index
    %c0_28 = arith.constant 0 : index
    %37 = vector.load %arg11[%c0_25, %c0_26, %c0_27, %c0_28] : memref<4x1x8x8xf32, #tpu.memory_space<vmem>>, vector<1x1x8x8xf32>
    %38 = vector.shape_cast %37 : vector<1x1x8x8xf32> to vector<8x8xf32>
    %39 = vector.shape_cast %36 : vector<8x8xf32> to vector<1x1x8x8xf32>
    tpu.vector_store %arg11[%c0_25, %c0_26, %c0_27, %c0_28], %39 {strides = array<i32>} : memref<4x1x8x8xf32, #tpu.memory_space<vmem>>, vector<1x1x8x8xf32>,
    %40 = arith.truncf %36 : vector<8x8xf32> to vector<8x8xbf16>
    %cst_29 = arith.constant dense<0.000000e+00> : vector<8x8xf32>
    %41 = tpu.matmul %40, %25, %cst_29 {dimension_numbers = #tpu.dot_dimension_numbers<[1], [0], [0], [1], [0, 0, 1, 1], [], []>} : vector<8x8xbf16>, vector<8x8xbf16>, vector<8x8xf32> -> vector<8x8xf32>
    %c0_30 = arith.constant 0 : index
    %c0_31 = arith.constant 0 : index
    %42 = vector.load %arg12[%c0_30, %c0_31] : memref<8x32xf32, #tpu.memory_space<vmem>>, vector<8x32xf32>
    %43 = arith.truncf %41 : vector<8x8xf32> to vector<8x8xbf16>
    %44 = vector.extract_strided_slice %20 {offsets = [0, 0], sizes = [8, 32], strides = [1, 1]} : vector<32x32xbf16> to vector<8x32xbf16>
    %cst_32 = arith.constant dense<0.000000e+00> : vector<8x32xf32>
    %45 = tpu.matmul %43, %44, %cst_32 {dimension_numbers = #tpu.dot_dimension_numbers<[1], [0], [0], [1], [0, 0, 1, 1], [], []>} : vector<8x8xbf16>, vector<8x32xbf16>, vector<8x32xf32> -> vector<8x32xf32>
    %46 = arith.addf %42, %45 : vector<8x32xf32>
    %c0_33 = arith.constant 0 : index
    %c0_34 = arith.constant 0 : index
    %47 = vector.load %arg12[%c0_33, %c0_34] : memref<8x32xf32, #tpu.memory_space<vmem>>, vector<8x32xf32>
    tpu.vector_store %arg12[%c0_33, %c0_34], %46 {strides = array<i32>} : memref<8x32xf32, #tpu.memory_space<vmem>>, vector<8x32xf32>,
    %48 = vector.extract_strided_slice %17 {offsets = [0, 8], sizes = [8, 8], strides = [1, 1]} : vector<8x32xbf16> to vector<8x8xbf16>
    %49 = vector.extract_strided_slice %18 {offsets = [0, 8], sizes = [8, 8], strides = [1, 1]} : vector<8x32xbf16> to vector<8x8xbf16>
    %50 = vector.extract_strided_slice %19 {offsets = [0, 8], sizes = [8, 8], strides = [1, 1]} : vector<8x32xbf16> to vector<8x8xbf16>
    %cst_35 = arith.constant dense<0.000000e+00> : vector<8x8xf32>
    %51 = tpu.matmul %48, %49, %cst_35 {dimension_numbers = #tpu.dot_dimension_numbers<[1], [1], [0], [0], [0, 0, 1, 0], [], []>} : vector<8x8xbf16>, vector<8x8xbf16>, vector<8x8xf32> -> vector<8x8xf32>
    %cst_36 = arith.constant dense<0xFF800000> : vector<8xf32>
    %52 = vector.multi_reduction <maximumf>, %51, %cst_36 [1] : vector<8x8xf32> to vector<8xf32>
    %53 = vector.shape_cast %52 : vector<8xf32> to vector<8x1xf32>
    %54 = vector.broadcast %53 : vector<8x1xf32> to vector<8x8xf32>
    %55 = arith.subf %51, %54 : vector<8x8xf32>
    %56 = math.exp %55 : vector<8x8xf32>
    %cst_37 = arith.constant dense<0.000000e+00> : vector<8xf32>
    %57 = vector.multi_reduction <add>, %56, %cst_37 [1] : vector<8x8xf32> to vector<8xf32>
    %58 = vector.shape_cast %57 : vector<8xf32> to vector<8x1xf32>
    %59 = tpu.reciprocal %58 {approx = true} : vector<8x1xf32> -> vector<8x1xf32>
    %60 = vector.broadcast %59 : vector<8x1xf32> to vector<8x8xf32>
    %61 = arith.mulf %56, %60 : vector<8x8xf32>
    %c1 = arith.constant 1 : index
    %c0_38 = arith.constant 0 : index
    %c0_39 = arith.constant 0 : index
    %c0_40 = arith.constant 0 : index
    %62 = vector.load %arg11[%c1, %c0_38, %c0_39, %c0_40] : memref<4x1x8x8xf32, #tpu.memory_space<vmem>>, vector<1x1x8x8xf32>
    %63 = vector.shape_cast %62 : vector<1x1x8x8xf32> to vector<8x8xf32>
    %64 = vector.shape_cast %61 : vector<8x8xf32> to vector<1x1x8x8xf32>
    tpu.vector_store %arg11[%c1, %c0_38, %c0_39, %c0_40], %64 {strides = array<i32>} : memref<4x1x8x8xf32, #tpu.memory_space<vmem>>, vector<1x1x8x8xf32>,
    %65 = arith.truncf %61 : vector<8x8xf32> to vector<8x8xbf16>
    %cst_41 = arith.constant dense<0.000000e+00> : vector<8x8xf32>
    %66 = tpu.matmul %65, %50, %cst_41 {dimension_numbers = #tpu.dot_dimension_numbers<[1], [0], [0], [1], [0, 0, 1, 1], [], []>} : vector<8x8xbf16>, vector<8x8xbf16>, vector<8x8xf32> -> vector<8x8xf32>
    %c0_42 = arith.constant 0 : index
    %c0_43 = arith.constant 0 : index
    %67 = vector.load %arg12[%c0_42, %c0_43] : memref<8x32xf32, #tpu.memory_space<vmem>>, vector<8x32xf32>
    %68 = arith.truncf %66 : vector<8x8xf32> to vector<8x8xbf16>
    %69 = vector.extract_strided_slice %20 {offsets = [8, 0], sizes = [8, 32], strides = [1, 1]} : vector<32x32xbf16> to vector<8x32xbf16>
    %cst_44 = arith.constant dense<0.000000e+00> : vector<8x32xf32>
    %70 = tpu.matmul %68, %69, %cst_44 {dimension_numbers = #tpu.dot_dimension_numbers<[1], [0], [0], [1], [0, 0, 1, 1], [], []>} : vector<8x8xbf16>, vector<8x32xbf16>, vector<8x32xf32> -> vector<8x32xf32>
    %71 = arith.addf %67, %70 : vector<8x32xf32>
    %c0_45 = arith.constant 0 : index
    %c0_46 = arith.constant 0 : index
    %72 = vector.load %arg12[%c0_45, %c0_46] : memref<8x32xf32, #tpu.memory_space<vmem>>, vector<8x32xf32>
    tpu.vector_store %arg12[%c0_45, %c0_46], %71 {strides = array<i32>} : memref<8x32xf32, #tpu.memory_space<vmem>>, vector<8x32xf32>,
    %73 = vector.extract_strided_slice %17 {offsets = [0, 16], sizes = [8, 8], strides = [1, 1]} : vector<8x32xbf16> to vector<8x8xbf16>
    %74 = vector.extract_strided_slice %18 {offsets = [0, 16], sizes = [8, 8], strides = [1, 1]} : vector<8x32xbf16> to vector<8x8xbf16>
    %75 = vector.extract_strided_slice %19 {offsets = [0, 16], sizes = [8, 8], strides = [1, 1]} : vector<8x32xbf16> to vector<8x8xbf16>
    %cst_47 = arith.constant dense<0.000000e+00> : vector<8x8xf32>
    %76 = tpu.matmul %73, %74, %cst_47 {dimension_numbers = #tpu.dot_dimension_numbers<[1], [1], [0], [0], [0, 0, 1, 0], [], []>} : vector<8x8xbf16>, vector<8x8xbf16>, vector<8x8xf32> -> vector<8x8xf32>
    %cst_48 = arith.constant dense<0xFF800000> : vector<8xf32>
    %77 = vector.multi_reduction <maximumf>, %76, %cst_48 [1] : vector<8x8xf32> to vector<8xf32>
    %78 = vector.shape_cast %77 : vector<8xf32> to vector<8x1xf32>
    %79 = vector.broadcast %78 : vector<8x1xf32> to vector<8x8xf32>
    %80 = arith.subf %76, %79 : vector<8x8xf32>
    %81 = math.exp %80 : vector<8x8xf32>
    %cst_49 = arith.constant dense<0.000000e+00> : vector<8xf32>
    %82 = vector.multi_reduction <add>, %81, %cst_49 [1] : vector<8x8xf32> to vector<8xf32>
    %83 = vector.shape_cast %82 : vector<8xf32> to vector<8x1xf32>
    %84 = tpu.reciprocal %83 {approx = true} : vector<8x1xf32> -> vector<8x1xf32>
    %85 = vector.broadcast %84 : vector<8x1xf32> to vector<8x8xf32>
    %86 = arith.mulf %81, %85 : vector<8x8xf32>
    %c2 = arith.constant 2 : index
    %c0_50 = arith.constant 0 : index
    %c0_51 = arith.constant 0 : index
    %c0_52 = arith.constant 0 : index
    %87 = vector.load %arg11[%c2, %c0_50, %c0_51, %c0_52] : memref<4x1x8x8xf32, #tpu.memory_space<vmem>>, vector<1x1x8x8xf32>
    %88 = vector.shape_cast %87 : vector<1x1x8x8xf32> to vector<8x8xf32>
    %89 = vector.shape_cast %86 : vector<8x8xf32> to vector<1x1x8x8xf32>
    tpu.vector_store %arg11[%c2, %c0_50, %c0_51, %c0_52], %89 {strides = array<i32>} : memref<4x1x8x8xf32, #tpu.memory_space<vmem>>, vector<1x1x8x8xf32>,
    %90 = arith.truncf %86 : vector<8x8xf32> to vector<8x8xbf16>
    %cst_53 = arith.constant dense<0.000000e+00> : vector<8x8xf32>
    %91 = tpu.matmul %90, %75, %cst_53 {dimension_numbers = #tpu.dot_dimension_numbers<[1], [0], [0], [1], [0, 0, 1, 1], [], []>} : vector<8x8xbf16>, vector<8x8xbf16>, vector<8x8xf32> -> vector<8x8xf32>
    %c0_54 = arith.constant 0 : index
    %c0_55 = arith.constant 0 : index
    %92 = vector.load %arg12[%c0_54, %c0_55] : memref<8x32xf32, #tpu.memory_space<vmem>>, vector<8x32xf32>
    %93 = arith.truncf %91 : vector<8x8xf32> to vector<8x8xbf16>
    %94 = vector.extract_strided_slice %20 {offsets = [16, 0], sizes = [8, 32], strides = [1, 1]} : vector<32x32xbf16> to vector<8x32xbf16>
    %cst_56 = arith.constant dense<0.000000e+00> : vector<8x32xf32>
    %95 = tpu.matmul %93, %94, %cst_56 {dimension_numbers = #tpu.dot_dimension_numbers<[1], [0], [0], [1], [0, 0, 1, 1], [], []>} : vector<8x8xbf16>, vector<8x32xbf16>, vector<8x32xf32> -> vector<8x32xf32>
    %96 = arith.addf %92, %95 : vector<8x32xf32>
    %c0_57 = arith.constant 0 : index
    %c0_58 = arith.constant 0 : index
    %97 = vector.load %arg12[%c0_57, %c0_58] : memref<8x32xf32, #tpu.memory_space<vmem>>, vector<8x32xf32>
    tpu.vector_store %arg12[%c0_57, %c0_58], %96 {strides = array<i32>} : memref<8x32xf32, #tpu.memory_space<vmem>>, vector<8x32xf32>,
    %98 = vector.extract_strided_slice %17 {offsets = [0, 24], sizes = [8, 8], strides = [1, 1]} : vector<8x32xbf16> to vector<8x8xbf16>
    %99 = vector.extract_strided_slice %18 {offsets = [0, 24], sizes = [8, 8], strides = [1, 1]} : vector<8x32xbf16> to vector<8x8xbf16>
    %100 = vector.extract_strided_slice %19 {offsets = [0, 24], sizes = [8, 8], strides = [1, 1]} : vector<8x32xbf16> to vector<8x8xbf16>
    %cst_59 = arith.constant dense<0.000000e+00> : vector<8x8xf32>
    %101 = tpu.matmul %98, %99, %cst_59 {dimension_numbers = #tpu.dot_dimension_numbers<[1], [1], [0], [0], [0, 0, 1, 0], [], []>} : vector<8x8xbf16>, vector<8x8xbf16>, vector<8x8xf32> -> vector<8x8xf32>
    %cst_60 = arith.constant dense<0xFF800000> : vector<8xf32>
    %102 = vector.multi_reduction <maximumf>, %101, %cst_60 [1] : vector<8x8xf32> to vector<8xf32>
    %103 = vector.shape_cast %102 : vector<8xf32> to vector<8x1xf32>
    %104 = vector.broadcast %103 : vector<8x1xf32> to vector<8x8xf32>
    %105 = arith.subf %101, %104 : vector<8x8xf32>
    %106 = math.exp %105 : vector<8x8xf32>
    %cst_61 = arith.constant dense<0.000000e+00> : vector<8xf32>
    %107 = vector.multi_reduction <add>, %106, %cst_61 [1] : vector<8x8xf32> to vector<8xf32>
    %108 = vector.shape_cast %107 : vector<8xf32> to vector<8x1xf32>
    %109 = tpu.reciprocal %108 {approx = true} : vector<8x1xf32> -> vector<8x1xf32>
    %110 = vector.broadcast %109 : vector<8x1xf32> to vector<8x8xf32>
    %111 = arith.mulf %106, %110 : vector<8x8xf32>
    %c3 = arith.constant 3 : index
    %c0_62 = arith.constant 0 : index
    %c0_63 = arith.constant 0 : index
    %c0_64 = arith.constant 0 : index
    %112 = vector.load %arg11[%c3, %c0_62, %c0_63, %c0_64] : memref<4x1x8x8xf32, #tpu.memory_space<vmem>>, vector<1x1x8x8xf32>
    %113 = vector.shape_cast %112 : vector<1x1x8x8xf32> to vector<8x8xf32>
    %114 = vector.shape_cast %111 : vector<8x8xf32> to vector<1x1x8x8xf32>
    tpu.vector_store %arg11[%c3, %c0_62, %c0_63, %c0_64], %114 {strides = array<i32>} : memref<4x1x8x8xf32, #tpu.memory_space<vmem>>, vector<1x1x8x8xf32>,
    %115 = arith.truncf %111 : vector<8x8xf32> to vector<8x8xbf16>
    %cst_65 = arith.constant dense<0.000000e+00> : vector<8x8xf32>
    %116 = tpu.matmul %115, %100, %cst_65 {dimension_numbers = #tpu.dot_dimension_numbers<[1], [0], [0], [1], [0, 0, 1, 1], [], []>} : vector<8x8xbf16>, vector<8x8xbf16>, vector<8x8xf32> -> vector<8x8xf32>
    %c0_66 = arith.constant 0 : index
    %c0_67 = arith.constant 0 : index
    %117 = vector.load %arg12[%c0_66, %c0_67] : memref<8x32xf32, #tpu.memory_space<vmem>>, vector<8x32xf32>
    %118 = arith.truncf %116 : vector<8x8xf32> to vector<8x8xbf16>
    %119 = vector.extract_strided_slice %20 {offsets = [24, 0], sizes = [8, 32], strides = [1, 1]} : vector<32x32xbf16> to vector<8x32xbf16>
    %cst_68 = arith.constant dense<0.000000e+00> : vector<8x32xf32>
    %120 = tpu.matmul %118, %119, %cst_68 {dimension_numbers = #tpu.dot_dimension_numbers<[1], [0], [0], [1], [0, 0, 1, 1], [], []>} : vector<8x8xbf16>, vector<8x32xbf16>, vector<8x32xf32> -> vector<8x32xf32>
    %121 = arith.addf %117, %120 : vector<8x32xf32>
    %c0_69 = arith.constant 0 : index
    %c0_70 = arith.constant 0 : index
    %122 = vector.load %arg12[%c0_69, %c0_70] : memref<8x32xf32, #tpu.memory_space<vmem>>, vector<8x32xf32>
    tpu.vector_store %arg12[%c0_69, %c0_70], %121 {strides = array<i32>} : memref<8x32xf32, #tpu.memory_space<vmem>>, vector<8x32xf32>,
    %c0_71 = arith.constant 0 : index
    %c0_72 = arith.constant 0 : index
    %123 = vector.load %arg12[%c0_71, %c0_72] : memref<8x32xf32, #tpu.memory_space<vmem>>, vector<8x32xf32>
    %c0_73 = arith.constant 0 : index
    %c0_74 = arith.constant 0 : index
    %124 = vector.load %arg9[%c0_73, %c0_74] : memref<1x32xf32, #tpu.memory_space<vmem>>, vector<1x32xf32>
    %125 = vector.broadcast %124 : vector<1x32xf32> to vector<8x32xf32>
    %126 = arith.addf %123, %125 : vector<8x32xf32>
    %c0_75 = arith.constant 0 : index
    %c0_76 = arith.constant 0 : index
    %c0_77 = arith.constant 0 : index
    %127 = vector.load %arg10[%c0_75, %c0_76, %c0_77] : memref<1x8x32xf32, #tpu.memory_space<vmem>>, vector<1x8x32xf32>
    %128 = vector.shape_cast %127 : vector<1x8x32xf32> to vector<8x32xf32>
    %129 = vector.shape_cast %126 : vector<8x32xf32> to vector<1x8x32xf32>
    tpu.vector_store %arg10[%c0_75, %c0_76, %c0_77], %129 {strides = array<i32>} : memref<1x8x32xf32, #tpu.memory_space<vmem>>, vector<1x8x32xf32>,
    return
  }
  func.func @transform_0(%arg0: i32, %arg1: i32) -> (i32, i32, i32) {
    %c0_i32 = arith.constant 0 : i32
    %c0_i32_0 = arith.constant 0 : i32
    return %arg0, %arg1, %c0_i32 : i32, i32, i32
  }
  func.func @transform_1(%arg0: i32, %arg1: i32) -> (i32, i32, i32) {
    %c0_i32 = arith.constant 0 : i32
    %c0_i32_0 = arith.constant 0 : i32
    %c0_i32_1 = arith.constant 0 : i32
    return %arg0, %c0_i32, %c0_i32_0 : i32, i32, i32
  }
  func.func @transform_2(%arg0: i32, %arg1: i32) -> (i32, i32, i32) {
    %c0_i32 = arith.constant 0 : i32
    %c0_i32_0 = arith.constant 0 : i32
    %c0_i32_1 = arith.constant 0 : i32
    return %arg0, %c0_i32, %c0_i32_0 : i32, i32, i32
  }
  func.func @transform_3(%arg0: i32, %arg1: i32) -> (i32, i32) {
    %c0_i32 = arith.constant 0 : i32
    %c0_i32_0 = arith.constant 0 : i32
    %c0_i32_1 = arith.constant 0 : i32
    return %c0_i32, %c0_i32_0 : i32, i32
  }
  func.func @transform_4(%arg0: i32, %arg1: i32) -> (i32, i32) {
    %c0_i32 = arith.constant 0 : i32
    %c0_i32_0 = arith.constant 0 : i32
    %c0_i32_1 = arith.constant 0 : i32
    return %c0_i32, %c0_i32_0 : i32, i32
  }
  func.func @transform_5(%arg0: i32, %arg1: i32) -> (i32, i32) {
    %c0_i32 = arith.constant 0 : i32
    %c0_i32_0 = arith.constant 0 : i32
    %c0_i32_1 = arith.constant 0 : i32
    return %c0_i32, %c0_i32_0 : i32, i32
  }
  func.func @transform_6(%arg0: i32, %arg1: i32) -> (i32, i32) {
    %c0_i32 = arith.constant 0 : i32
    %c0_i32_0 = arith.constant 0 : i32
    %c0_i32_1 = arith.constant 0 : i32
    return %c0_i32, %c0_i32_0 : i32, i32
  }
  func.func @transform_7(%arg0: i32, %arg1: i32) -> (i32, i32) {
    %c0_i32 = arith.constant 0 : i32
    %c0_i32_0 = arith.constant 0 : i32
    %c0_i32_1 = arith.constant 0 : i32
    return %c0_i32, %c0_i32_0 : i32, i32
  }
  func.func @transform_8(%arg0: i32, %arg1: i32) -> (i32, i32, i32) {
    %c0_i32 = arith.constant 0 : i32
    %c0_i32_0 = arith.constant 0 : i32
    return %arg0, %arg1, %c0_i32 : i32, i32, i32
  }
  func.func @transform_9(%arg0: i32, %arg1: i32) -> (i32, i32, i32, i32) {
    %c0_i32 = arith.constant 0 : i32
    %c0_i32_0 = arith.constant 0 : i32
    %c0_i32_1 = arith.constant 0 : i32
    return %c0_i32, %arg0, %arg1, %c0_i32_0 : i32, i32, i32, i32
  }
}

</mosaic_0001>

<llo_original>
// kernel: tpu_custom_call.1
$region0: #{tpu_custom_call.1}
  #allocation0 [shape = 'u32[]', space=smem, size = 0x4, offset = 0x4, fixed_abs, tag = 'smem constant byte address 0x4 - core index']
  #allocation1 [shape = 'u32[72,128]{1,0:T(1,128)}', space=vmem, size = 0x9000, scoped, tag = 'internal scratch']
  #allocation2 [shape = 'f32[8,32]{1,0:T(8,128)}', space=vmem, size = 0x1000, scoped, tag = 'scratch operand']
  %s0 = inlined_call_operand.hbm [shape: f32[2,8,32], index: 0, kind: input, shape index: {}]
  %s1 = inlined_call_operand.hbm [shape: f32[2,8,32], index: 1, kind: input, shape index: {}]
  %s2 = inlined_call_operand.hbm [shape: f32[2,8,32], index: 2, kind: input, shape index: {}]
  %s3 = inlined_call_operand.hbm [shape: bf16[32,32], index: 3, kind: input, shape index: {}]
  %s4 = inlined_call_operand.hbm [shape: bf16[32,32], index: 4, kind: input, shape index: {}]
  %s5 = inlined_call_operand.hbm [shape: bf16[32,32], index: 5, kind: input, shape index: {}]
  %s6 = inlined_call_operand.hbm [shape: bf16[32,32], index: 6, kind: input, shape index: {}]
  %s7 = inlined_call_operand.vmem [shape: f32[1,32], index: 7, kind: input, shape index: {}]
  %s8 = inlined_call_operand.hbm [shape: f32[2,8,32], index: 8, kind: output, shape index: {0}]
  %s9 = inlined_call_operand.hbm [shape: f32[4,2,8,8], index: 9, kind: output, shape index: {1}]
  %10 = xla_tuple %s8, %s9
  %s11 = sld [smem:[#allocation0]]
  $region101: #{tpu_custom_call.1} parent=0
    _
  %s13 = ssub.s32 1, %s11
  %s14 = scalar_select 0, %s13, %s11
  $region1: #{tpu_custom_call.1} parent=0
    #allocation3 [shape = 'u8[8192]{0}', space=vmem, size = 0x2000, scoped, tag = 'input window, operand 0']
    #allocation4 [shape = 's32[2]{0}', space=sflag, size = 0x8, scoped, tag = 'scoped memory for tpu_custom_call.1']
    #allocation5 [shape = 's32[2]{0}', space=sflag, size = 0x8, scoped, tag = 'scoped memory for tpu_custom_call.1']
    #allocation6 [shape = 'u8[8192]{0}', space=vmem, size = 0x2000, scoped, tag = 'input window, operand 1']
    #allocation7 [shape = 's32[2]{0}', space=sflag, size = 0x8, scoped, tag = 'scoped memory for tpu_custom_call.1']
    #allocation8 [shape = 'u8[8192]{0}', space=vmem, size = 0x2000, scoped, tag = 'input window, operand 2']
    #allocation9 [shape = 'u8[8192]{0}', space=vmem, size = 0x2000, scoped, tag = 'input window, operand 3, single buffered']
    #allocation10 [shape = 's32[1]{0}', space=sflag, size = 0x4, scoped, tag = 'scoped memory for tpu_custom_call.1']
    #allocation11 [shape = 'u8[8192]{0}', space=vmem, size = 0x2000, scoped, tag = 'input window, operand 4, single buffered']
    #allocation12 [shape = 'u8[8192]{0}', space=vmem, size = 0x2000, scoped, tag = 'input window, operand 5, single buffered']
    #allocation13 [shape = 's32[1]{0}', space=sflag, size = 0x4, scoped, tag = 'scoped memory for tpu_custom_call.1']
    #allocation14 [shape = 'u8[8192]{0}', space=vmem, size = 0x2000, scoped, tag = 'input window, operand 6, single buffered']
    #allocation15 [shape = 'u8[8192]{0}', space=vmem, size = 0x2000, scoped, tag = 'output window, operand 0']
    #allocation16 [shape = 'u8[32768]{0}', space=vmem, size = 0x8000, scoped, tag = 'output window, operand 1']
    #allocation17 [shape = 's32[2]{0}', space=sflag, size = 0x8, scoped, tag = 'scoped memory for tpu_custom_call.1']
    %15 = vsyncpa [#allocation4], 0
    %s16 = scalar_lea.sflag [#allocation4], 1
    %17 = vsyncpa %s16, 0
    %18 = vsyncpa [#allocation7], 0
    %s19 = scalar_lea.sflag [#allocation7], 1
    %20 = vsyncpa %s19, 0
    %21 = vsyncpa [#allocation10], 0
    %22 = vsyncpa [#allocation13], 0
    %23 = vsyncpa [#allocation5], 0
    %s24 = scalar_lea.sflag [#allocation5], 1
    %25 = vsyncpa %s24, 0
    %26 = vsyncpa [#allocation17], 0
    %s27 = scalar_lea.sflag [#allocation17], 1
    %28 = vsyncpa %s27, 0
    loop: start=0, step=1, limit=4
    $region2: #{tpu_custom_call.1} parent=1 // loop_pre_header
      _
    $region3: #{tpu_custom_call.1} parent=1 // loop_header
      %s30 = sphi 0, %s34
      %p31 = scmp.ge.s32.totalorder %s30, 4
      %s37 = sphi 0, %s49
      %s38 = sphi 0, %s45
      %s39 = sphi 0, %s37
      %s40 = sphi 0, %s38
      %s41 = sphi 0, %s39
      %s42 = sphi 0, %s40
      %s54 = sphi 0, %s56
      %s57 = sphi 0, %s54
      %s58 = sphi 0, %s57
      %s74 = sphi 0, %s58
      %s80 = sphi 0, %s82
      %s83 = sphi 0, %s80
      %s84 = sphi 0, %s83
      %s100 = sphi 0, %s84
      %s106 = sphi 0, %s108
      %s109 = sphi 0, %s106
      %s110 = sphi 0, %s109
      %s126 = sphi 0, %s110
      %s130 = sphi 0, %s130
      %s132 = sphi 0, %s130
      %s133 = sphi 0, %s132
      %s147 = sphi 0, %s133
      %s151 = sphi 0, %s151
      %s153 = sphi 0, %s151
      %s154 = sphi 0, %s153
      %s168 = sphi 0, %s154
      %s172 = sphi 0, %s172
      %s174 = sphi 0, %s172
      %s175 = sphi 0, %s174
      %s189 = sphi 0, %s175
      %s193 = sphi 0, %s193
      %s195 = sphi 0, %s193
      %s196 = sphi 0, %s195
      %s210 = sphi 0, %s196
      %s214 = sphi 0, %s214
      %s216 = sphi 0, %s214
      %s217 = sphi 0, %s216
      %s231 = sphi 0, %s217
      %s239 = sphi 0, %s241
      %s242 = sphi 0, %s239
      %s243 = sphi 0, %s242
      %s259 = sphi 0, %s243
      %s267 = sphi 0, %s269
      %s270 = sphi 0, %s267
      %s271 = sphi 0, %s270
      %s287 = sphi 0, %s271
    $region4: #{tpu_custom_call.1} parent=1 // loop_header_branch
      %33 = sbr.rel (%p31) target = $region8
    $region5: #{tpu_custom_call.1} parent=1 // loop_body
      %s35 = ssub.s32 %s30, 1
      %s36 = ssub.s32 %s30, 2
      %s43 = sadd.s32 1, %s38
      %p44 = scmp.ge.s32.totalorder %s43, 1
      %s45 = scalar_select %p44, 0, %s43
      %s46 = sadd.s32 1, %s37
      %s47 = scalar_select %p44, %s46, %s37
      %p48 = scmp.ge.s32.totalorder %s47, 2
      %s49 = scalar_select %p48, 0, %s47
      %s50 = ssub.s32 %s37, %s49
      %s51 = ssub.s32 %s38, %s45
      %s52 = sor.u32 %s50, %s51
      %p53 = scmp.eq.s32.totalorder %s52, 0
      %s55 = sadd.s32 %s54, 1
      %s56 = scalar_select %p53, %s54, %s55
      %p59 = pneg %p53
      %p60 = scmp.eq.s32.totalorder %s30, 1
      %p61 = por %p59, %p60
      %p62 = scmp.ne.s32.totalorder %s54, %s57
      %p63 = scmp.eq.s32.totalorder %s30, 0
      %p64 = por %p62, %p63
      %p65 = scmp.ne.s32.totalorder %s54, %s57
      %p66 = scmp.eq.s32.totalorder %s35, 1
      %p67 = por %p65, %p66
      %p68 = scmp.ne.s32.totalorder %s57, %s58
      %p69 = scmp.eq.s32.totalorder %s35, 0
      %p70 = por %p68, %p69
      %p71 = scmp.ne.s32.totalorder %s57, %s58
      %p72 = scmp.eq.s32.totalorder %s36, 1
      %p73 = por %p71, %p72
      %p75 = scmp.ne.s32.totalorder %s58, %s74
      %p76 = scmp.eq.s32.totalorder %s36, 0
      %p77 = por %p75, %p76
      %s78 = ssub.s32 %s37, %s49
      %p79 = scmp.eq.s32.totalorder %s78, 0
      %s81 = sadd.s32 %s80, 1
      %s82 = scalar_select %p79, %s80, %s81
      %p85 = pneg %p79
      %p86 = scmp.eq.s32.totalorder %s30, 1
      %p87 = por %p85, %p86
      %p88 = scmp.ne.s32.totalorder %s80, %s83
      %p89 = scmp.eq.s32.totalorder %s30, 0
      %p90 = por %p88, %p89
      %p91 = scmp.ne.s32.totalorder %s80, %s83
      %p92 = scmp.eq.s32.totalorder %s35, 1
      %p93 = por %p91, %p92
      %p94 = scmp.ne.s32.totalorder %s83, %s84
      %p95 = scmp.eq.s32.totalorder %s35, 0
      %p96 = por %p94, %p95
      %p97 = scmp.ne.s32.totalorder %s83, %s84
      %p98 = scmp.eq.s32.totalorder %s36, 1
      %p99 = por %p97, %p98
      %p101 = scmp.ne.s32.totalorder %s84, %s100
      %p102 = scmp.eq.s32.totalorder %s36, 0
      %p103 = por %p101, %p102
      %s104 = ssub.s32 %s37, %s49
      %p105 = scmp.eq.s32.totalorder %s104, 0
      %s107 = sadd.s32 %s106, 1
      %s108 = scalar_select %p105, %s106, %s107
      %p111 = pneg %p105
      %p112 = scmp.eq.s32.totalorder %s30, 1
      %p113 = por %p111, %p112
      %p114 = scmp.ne.s32.totalorder %s106, %s109
      %p115 = scmp.eq.s32.totalorder %s30, 0
      %p116 = por %p114, %p115
      %p117 = scmp.ne.s32.totalorder %s106, %s109
      %p118 = scmp.eq.s32.totalorder %s35, 1
      %p119 = por %p117, %p118
      %p120 = scmp.ne.s32.totalorder %s109, %s110
      %p121 = scmp.eq.s32.totalorder %s35, 0
      %p122 = por %p120, %p121
      %p123 = scmp.ne.s32.totalorder %s109, %s110
      %p124 = scmp.eq.s32.totalorder %s36, 1
      %p125 = por %p123, %p124
      %p127 = scmp.ne.s32.totalorder %s110, %s126
      %p128 = scmp.eq.s32.totalorder %s36, 0
      %p129 = por %p127, %p128
      %s131 = sadd.s32 %s130, 1
      %p134 = scmp.eq.s32.totalorder %s30, 1
      %p135 = scmp.ne.s32.totalorder %s130, %s132
      %p136 = scmp.eq.s32.totalorder %s30, 0
      %p137 = por %p135, %p136
      %p138 = scmp.ne.s32.totalorder %s130, %s132
      %p139 = scmp.eq.s32.totalorder %s35, 1
      %p140 = por %p138, %p139
      %p141 = scmp.ne.s32.totalorder %s132, %s133
      %p142 = scmp.eq.s32.totalorder %s35, 0
      %p143 = por %p141, %p142
      %p144 = scmp.ne.s32.totalorder %s132, %s133
      %p145 = scmp.eq.s32.totalorder %s36, 1
      %p146 = por %p144, %p145
      %p148 = scmp.ne.s32.totalorder %s133, %s147
      %p149 = scmp.eq.s32.totalorder %s36, 0
      %p150 = por %p148, %p149
      %s152 = sadd.s32 %s151, 1
      %p155 = scmp.eq.s32.totalorder %s30, 1
      %p156 = scmp.ne.s32.totalorder %s151, %s153
      %p157 = scmp.eq.s32.totalorder %s30, 0
      %p158 = por %p156, %p157
      %p159 = scmp.ne.s32.totalorder %s151, %s153
      %p160 = scmp.eq.s32.totalorder %s35, 1
      %p161 = por %p159, %p160
      %p162 = scmp.ne.s32.totalorder %s153, %s154
      %p163 = scmp.eq.s32.totalorder %s35, 0
      %p164 = por %p162, %p163
      %p165 = scmp.ne.s32.totalorder %s153, %s154
      %p166 = scmp.eq.s32.totalorder %s36, 1
      %p167 = por %p165, %p166
      %p169 = scmp.ne.s32.totalorder %s154, %s168
      %p170 = scmp.eq.s32.totalorder %s36, 0
      %p171 = por %p169, %p170
      %s173 = sadd.s32 %s172, 1
      %p176 = scmp.eq.s32.totalorder %s30, 1
      %p177 = scmp.ne.s32.totalorder %s172, %s174
      %p178 = scmp.eq.s32.totalorder %s30, 0
      %p179 = por %p177, %p178
      %p180 = scmp.ne.s32.totalorder %s172, %s174
      %p181 = scmp.eq.s32.totalorder %s35, 1
      %p182 = por %p180, %p181
      %p183 = scmp.ne.s32.totalorder %s174, %s175
      %p184 = scmp.eq.s32.totalorder %s35, 0
      %p185 = por %p183, %p184
      %p186 = scmp.ne.s32.totalorder %s174, %s175
      %p187 = scmp.eq.s32.totalorder %s36, 1
      %p188 = por %p186, %p187
      %p190 = scmp.ne.s32.totalorder %s175, %s189
      %p191 = scmp.eq.s32.totalorder %s36, 0
      %p192 = por %p190, %p191
      %s194 = sadd.s32 %s193, 1
      %p197 = scmp.eq.s32.totalorder %s30, 1
      %p198 = scmp.ne.s32.totalorder %s193, %s195
      %p199 = scmp.eq.s32.totalorder %s30, 0
      %p200 = por %p198, %p199
      %p201 = scmp.ne.s32.totalorder %s193, %s195
      %p202 = scmp.eq.s32.totalorder %s35, 1
      %p203 = por %p201, %p202
      %p204 = scmp.ne.s32.totalorder %s195, %s196
      %p205 = scmp.eq.s32.totalorder %s35, 0
      %p206 = por %p204, %p205
      %p207 = scmp.ne.s32.totalorder %s195, %s196
      %p208 = scmp.eq.s32.totalorder %s36, 1
      %p209 = por %p207, %p208
      %p211 = scmp.ne.s32.totalorder %s196, %s210
      %p212 = scmp.eq.s32.totalorder %s36, 0
      %p213 = por %p211, %p212
      %s215 = sadd.s32 %s214, 1
      %p218 = scmp.eq.s32.totalorder %s30, 1
      %p219 = scmp.ne.s32.totalorder %s214, %s216
      %p220 = scmp.eq.s32.totalorder %s30, 0
      %p221 = por %p219, %p220
      %p222 = scmp.ne.s32.totalorder %s214, %s216
      %p223 = scmp.eq.s32.totalorder %s35, 1
      %p224 = por %p222, %p223
      %p225 = scmp.ne.s32.totalorder %s216, %s217
      %p226 = scmp.eq.s32.totalorder %s35, 0
      %p227 = por %p225, %p226
      %p228 = scmp.ne.s32.totalorder %s216, %s217
      %p229 = scmp.eq.s32.totalorder %s36, 1
      %p230 = por %p228, %p229
      %p232 = scmp.ne.s32.totalorder %s217, %s231
      %p233 = scmp.eq.s32.totalorder %s36, 0
      %p234 = por %p232, %p233
      %s235 = ssub.s32 %s37, %s49
      %s236 = ssub.s32 %s38, %s45
      %s237 = sor.u32 %s235, %s236
      %p238 = scmp.eq.s32.totalorder %s237, 0
      %s240 = sadd.s32 %s239, 1
      %s241 = scalar_select %p238, %s239, %s240
      %p244 = pneg %p238
      %p245 = scmp.eq.s32.totalorder %s30, 1
      %p246 = por %p244, %p245
      %p247 = scmp.ne.s32.totalorder %s239, %s242
      %p248 = scmp.eq.s32.totalorder %s30, 0
      %p249 = por %p247, %p248
      %p250 = scmp.ne.s32.totalorder %s239, %s242
      %p251 = scmp.eq.s32.totalorder %s35, 1
      %p252 = por %p250, %p251
      %p253 = scmp.ne.s32.totalorder %s242, %s243
      %p254 = scmp.eq.s32.totalorder %s35, 0
      %p255 = por %p253, %p254
      %p256 = scmp.ne.s32.totalorder %s242, %s243
      %p257 = scmp.eq.s32.totalorder %s36, 1
      %p258 = por %p256, %p257
      %p260 = scmp.ne.s32.totalorder %s243, %s259
      %p261 = scmp.eq.s32.totalorder %s36, 0
      %p262 = por %p260, %p261
      %s263 = ssub.s32 %s37, %s49
      %s264 = ssub.s32 %s38, %s45
      %s265 = sor.u32 %s263, %s264
      %p266 = scmp.eq.s32.totalorder %s265, 0
      %s268 = sadd.s32 %s267, 1
      %s269 = scalar_select %p266, %s267, %s268
      %p272 = pneg %p266
      %p273 = scmp.eq.s32.totalorder %s30, 1
      %p274 = por %p272, %p273
      %p275 = scmp.ne.s32.totalorder %s267, %s270
      %p276 = scmp.eq.s32.totalorder %s30, 0
      %p277 = por %p275, %p276
      %p278 = scmp.ne.s32.totalorder %s267, %s270
      %p279 = scmp.eq.s32.totalorder %s35, 1
      %p280 = por %p278, %p279
      %p281 = scmp.ne.s32.totalorder %s270, %s271
      %p282 = scmp.eq.s32.totalorder %s35, 0
      %p283 = por %p281, %p282
      %p284 = scmp.ne.s32.totalorder %s270, %s271
      %p285 = scmp.eq.s32.totalorder %s36, 1
      %p286 = por %p284, %p285
      %p288 = scmp.ne.s32.totalorder %s271, %s287
      %p289 = scmp.eq.s32.totalorder %s36, 0
      %p290 = por %p288, %p289
      %p291 = scmp.le.s32.totalorder 1, %s30
      %p292 = scmp.lt.s32.totalorder %s30, 3
      %p293 = pnand %p291, %p292
      %p294 = pneg %p293
      // Predicated region
      $region9: #{tpu_custom_call.1} parent=5 // pred_check
        _
      $region10: #{tpu_custom_call.1} parent=5 // pred_check_branch
        %296 = sbr.rel (%p293) target = $region12
      $region11: #{tpu_custom_call.1} parent=5 // pred_region
        %s297 = ssub.s32 %s30, 1
        // Predicated region
        $region13: #{tpu_custom_call.1} parent=11 // pred_check
          %p298 = pneg %p143
        $region14: #{tpu_custom_call.1} parent=11 // pred_check_branch
          %300 = sbr.rel (%p298) target = $region16
        $region15: #{tpu_custom_call.1} parent=11 // pred_region
          %302 = vsyncadd [#allocation10], 0
          %s303 = sshll.u32 %s3, 4
          %s304 = int_to_ptr.hbm [resolvable:$true] %s303
          %s305 = sshll.u32 [#allocation9], 4
          %s306 = int_to_ptr.vmem [resolvable:$true] %s305
          %311 = dma.hbm_to_vmem [thread:$0]  %s304, 256, %s306, [#allocation10], 64, 64, 4
        $region16: #{tpu_custom_call.1} parent=11 // pred_fallthru
          _
        // Predicated region
        $region17: #{tpu_custom_call.1} parent=11 // pred_check
          %p312 = pneg %p164
        $region18: #{tpu_custom_call.1} parent=11 // pred_check_branch
          %314 = sbr.rel (%p312) target = $region20
        $region19: #{tpu_custom_call.1} parent=11 // pred_region
          %316 = vsyncadd [#allocation10], 0
          %s317 = sshll.u32 %s4, 4
          %s318 = int_to_ptr.hbm [resolvable:$true] %s317
          %s319 = sshll.u32 [#allocation11], 4
          %s320 = int_to_ptr.vmem [resolvable:$true] %s319
          %325 = dma.hbm_to_vmem [thread:$0]  %s318, 256, %s320, [#allocation10], 64, 64, 4
        $region20: #{tpu_custom_call.1} parent=11 // pred_fallthru
          _
        // Predicated region
        $region21: #{tpu_custom_call.1} parent=11 // pred_check
          %p326 = pneg %p185
        $region22: #{tpu_custom_call.1} parent=11 // pred_check_branch
          %328 = sbr.rel (%p326) target = $region24
        $region23: #{tpu_custom_call.1} parent=11 // pred_region
          %330 = vsyncadd [#allocation13], 0
          %s331 = sshll.u32 %s5, 4
          %s332 = int_to_ptr.hbm [resolvable:$true] %s331
          %s333 = sshll.u32 [#allocation12], 4
          %s334 = int_to_ptr.vmem [resolvable:$true] %s333
          %339 = dma.hbm_to_vmem [thread:$0]  %s332, 256, %s334, [#allocation13], 64, 64, 4
        $region24: #{tpu_custom_call.1} parent=11 // pred_fallthru
          _
        // Predicated region
        $region25: #{tpu_custom_call.1} parent=11 // pred_check
          %p340 = pneg %p206
        $region26: #{tpu_custom_call.1} parent=11 // pred_check_branch
          %342 = sbr.rel (%p340) target = $region28
        $region27: #{tpu_custom_call.1} parent=11 // pred_region
          %344 = vsyncadd [#allocation13], 0
          %s345 = sshll.u32 %s6, 4
          %s346 = int_to_ptr.hbm [resolvable:$true] %s345
          %s347 = sshll.u32 [#allocation14], 4
          %s348 = int_to_ptr.vmem [resolvable:$true] %s347
          %353 = dma.hbm_to_vmem [thread:$0]  %s346, 256, %s348, [#allocation13], 64, 64, 4
        $region28: #{tpu_custom_call.1} parent=11 // pred_fallthru
          _
        // Predicated region
        $region29: #{tpu_custom_call.1} parent=11 // pred_check
          %p354 = pneg %p227
        $region30: #{tpu_custom_call.1} parent=11 // pred_check_branch
          %356 = sbr.rel (%p354) target = $region32
        $region31: #{tpu_custom_call.1} parent=11 // pred_region
          _
        $region32: #{tpu_custom_call.1} parent=11 // pred_fallthru
          _
      $region12: #{tpu_custom_call.1} parent=5 // pred_fallthru
        _
      %p357 = scmp.lt.s32.totalorder %s30, 2
      // Predicated region
      $region33: #{tpu_custom_call.1} parent=5 // pred_check
        %p358 = pneg %p357
      $region34: #{tpu_custom_call.1} parent=5 // pred_check_branch
        %360 = sbr.rel (%p358) target = $region36
      $region35: #{tpu_custom_call.1} parent=5 // pred_region
        // Predicated region
        $region37: #{tpu_custom_call.1} parent=35 // pred_check
          %p361 = pneg %p64
        $region38: #{tpu_custom_call.1} parent=35 // pred_check_branch
          %363 = sbr.rel (%p361) target = $region40
        $region39: #{tpu_custom_call.1} parent=35 // pred_region
          %s364 = sand.u32 %s54, 1
          %s365 = scalar_lea.sflag [#allocation4], %s364
          %s366 = sand.u32 %s54, 1
          %s367 = smul.addr %s366, 8
          %s368 = scalar_lea.vmem [#allocation3], %s367
          %370 = vsyncadd %s365, 0
          %s371 = sadd.s32 %s38, %s37
          %s372 = smul.addr %s371, 8
          %s373 = scalar_lea.hbm %s0, %s372
          %s375 = sshll.u32 %s373, 4
          %s376 = int_to_ptr.hbm [resolvable:$true] %s375
          %s377 = sshll.u32 %s368, 4
          %s378 = int_to_ptr.vmem [resolvable:$true] %s377
          %380 = dma.hbm_to_vmem [thread:$0]  %s376, 128, %s378, %s365
        $region40: #{tpu_custom_call.1} parent=35 // pred_fallthru
          _
        // Predicated region
        $region41: #{tpu_custom_call.1} parent=35 // pred_check
          %p381 = pneg %p90
        $region42: #{tpu_custom_call.1} parent=35 // pred_check_branch
          %383 = sbr.rel (%p381) target = $region44
        $region43: #{tpu_custom_call.1} parent=35 // pred_region
          %s384 = sand.u32 %s30, 1
          %s385 = scalar_lea.sflag [#allocation7], %s384
          %s386 = sand.u32 %s80, 1
          %s387 = smul.addr %s386, 8
          %s388 = scalar_lea.vmem [#allocation6], %s387
          %390 = vsyncadd %s385, 0
          %s391 = smul.addr %s37, 8
          %s392 = scalar_lea.hbm %s1, %s391
          %s394 = sshll.u32 %s392, 4
          %s395 = int_to_ptr.hbm [resolvable:$true] %s394
          %s396 = sshll.u32 %s388, 4
          %s397 = int_to_ptr.vmem [resolvable:$true] %s396
          %399 = dma.hbm_to_vmem [thread:$0]  %s395, 128, %s397, %s385
        $region44: #{tpu_custom_call.1} parent=35 // pred_fallthru
          _
        // Predicated region
        $region45: #{tpu_custom_call.1} parent=35 // pred_check
          %p400 = pneg %p116
        $region46: #{tpu_custom_call.1} parent=35 // pred_check_branch
          %402 = sbr.rel (%p400) target = $region48
        $region47: #{tpu_custom_call.1} parent=35 // pred_region
          %s403 = sand.u32 %s30, 1
          %s404 = scalar_lea.sflag [#allocation7], %s403
          %s405 = sand.u32 %s106, 1
          %s406 = smul.addr %s405, 8
          %s407 = scalar_lea.vmem [#allocation8], %s406
          %409 = vsyncadd %s404, 0
          %s410 = smul.addr %s37, 8
          %s411 = scalar_lea.hbm %s2, %s410
          %s413 = sshll.u32 %s411, 4
          %s414 = int_to_ptr.hbm [resolvable:$true] %s413
          %s415 = sshll.u32 %s407, 4
          %s416 = int_to_ptr.vmem [resolvable:$true] %s415
          %418 = dma.hbm_to_vmem [thread:$0]  %s414, 128, %s416, %s404
        $region48: #{tpu_custom_call.1} parent=35 // pred_fallthru
          _
      $region36: #{tpu_custom_call.1} parent=5 // pred_fallthru
        _
      %p419 = scmp.le.s32.totalorder 1, %s30
      %p420 = scmp.lt.s32.totalorder %s30, 3
      %p421 = pnand %p419, %p420
      %p422 = pneg %p421
      // Predicated region
      $region49: #{tpu_custom_call.1} parent=5 // pred_check
        _
      $region50: #{tpu_custom_call.1} parent=5 // pred_check_branch
        %424 = sbr.rel (%p421) target = $region52
      $region51: #{tpu_custom_call.1} parent=5 // pred_region
        %s425 = ssub.s32 %s30, 1
        %s426 = sand.u32 %s57, 1
        %s427 = scalar_lea.sflag [#allocation4], %s426
        %s428 = sand.u32 %s57, 1
        %s429 = smul.addr %s428, 8
        %s430 = scalar_lea.vmem [#allocation3], %s429
        // Predicated region
        $region53: #{tpu_custom_call.1} parent=51 // pred_check
          %p431 = pneg %p70
        $region54: #{tpu_custom_call.1} parent=51 // pred_check_branch
          %433 = sbr.rel (%p431) target = $region56
        $region55: #{tpu_custom_call.1} parent=51 // pred_region
          %435 = dma.done %s427, 128
        $region56: #{tpu_custom_call.1} parent=51 // pred_fallthru
          _
        %s436 = sand.u32 %s35, 1
        %s437 = scalar_lea.sflag [#allocation7], %s436
        %s438 = sand.u32 %s83, 1
        %s439 = smul.addr %s438, 8
        %s440 = scalar_lea.vmem [#allocation6], %s439
        // Predicated region
        $region57: #{tpu_custom_call.1} parent=51 // pred_check
          %p441 = pneg %p96
        $region58: #{tpu_custom_call.1} parent=51 // pred_check_branch
          %443 = sbr.rel (%p441) target = $region60
        $region59: #{tpu_custom_call.1} parent=51 // pred_region
          %445 = dma.done %s437, 128
        $region60: #{tpu_custom_call.1} parent=51 // pred_fallthru
          _
        %s446 = sand.u32 %s35, 1
        %s447 = scalar_lea.sflag [#allocation7], %s446
        %s448 = sand.u32 %s109, 1
        %s449 = smul.addr %s448, 8
        %s450 = scalar_lea.vmem [#allocation8], %s449
        // Predicated region
        $region61: #{tpu_custom_call.1} parent=51 // pred_check
          %p451 = pneg %p122
        $region62: #{tpu_custom_call.1} parent=51 // pred_check_branch
          %453 = sbr.rel (%p451) target = $region64
        $region63: #{tpu_custom_call.1} parent=51 // pred_region
          %455 = dma.done %s447, 128
        $region64: #{tpu_custom_call.1} parent=51 // pred_fallthru
          _
        // Predicated region
        $region65: #{tpu_custom_call.1} parent=51 // pred_check
          %p456 = pneg %p143
        $region66: #{tpu_custom_call.1} parent=51 // pred_check_branch
          %458 = sbr.rel (%p456) target = $region68
        $region67: #{tpu_custom_call.1} parent=51 // pred_region
          %460 = dma.done [#allocation10], 256
        $region68: #{tpu_custom_call.1} parent=51 // pred_fallthru
          _
        // Predicated region
        $region69: #{tpu_custom_call.1} parent=51 // pred_check
          %p461 = pneg %p164
        $region70: #{tpu_custom_call.1} parent=51 // pred_check_branch
          %463 = sbr.rel (%p461) target = $region72
        $region71: #{tpu_custom_call.1} parent=51 // pred_region
          %465 = dma.done [#allocation10], 256
        $region72: #{tpu_custom_call.1} parent=51 // pred_fallthru
          _
        // Predicated region
        $region73: #{tpu_custom_call.1} parent=51 // pred_check
          %p466 = pneg %p185
        $region74: #{tpu_custom_call.1} parent=51 // pred_check_branch
          %468 = sbr.rel (%p466) target = $region76
        $region75: #{tpu_custom_call.1} parent=51 // pred_region
          %470 = dma.done [#allocation13], 256
        $region76: #{tpu_custom_call.1} parent=51 // pred_fallthru
          _
        // Predicated region
        $region77: #{tpu_custom_call.1} parent=51 // pred_check
          %p471 = pneg %p206
        $region78: #{tpu_custom_call.1} parent=51 // pred_check_branch
          %473 = sbr.rel (%p471) target = $region80
        $region79: #{tpu_custom_call.1} parent=51 // pred_region
          %475 = dma.done [#allocation13], 256
        $region80: #{tpu_custom_call.1} parent=51 // pred_fallthru
          _
        %s476 = sand.u32 %s57, 1
        %s477 = scalar_lea.sflag [#allocation4], %s476
        %s478 = sand.u32 %s57, 1
        %s479 = smul.addr %s478, 8
        %s480 = scalar_lea.vmem [#allocation3], %s479
        %p481 = pneg %p70
        %p482 = pneg %p67
        %s483 = sand.u32 %s35, 1
        %s484 = scalar_lea.sflag [#allocation7], %s483
        %s485 = sand.u32 %s83, 1
        %s486 = smul.addr %s485, 8
        %s487 = scalar_lea.vmem [#allocation6], %s486
        %p488 = pneg %p96
        %p489 = pneg %p93
        %s490 = sand.u32 %s35, 1
        %s491 = scalar_lea.sflag [#allocation7], %s490
        %s492 = sand.u32 %s109, 1
        %s493 = smul.addr %s492, 8
        %s494 = scalar_lea.vmem [#allocation8], %s493
        %p495 = pneg %p122
        %p496 = pneg %p119
        %p497 = pneg %p143
        %p498 = pneg %p140
        %p499 = pneg %p164
        %p500 = pneg %p161
        %p501 = pneg %p185
        %p502 = pneg %p182
        %p503 = pneg %p206
        %p504 = pneg %p203
        %p505 = pneg %p227
        %p506 = pneg %p224
        %p507 = pneg %p255
        %p508 = pneg %p252
        %s509 = sand.u32 %s242, 1
        %s510 = scalar_lea.sflag [#allocation5], %s509
        %s511 = sand.u32 %s242, 1
        %s512 = smul.addr %s511, 8
        %s513 = scalar_lea.vmem [#allocation15], %s512
        %p514 = pneg %p283
        %p515 = pneg %p280
        %s516 = sand.u32 %s270, 1
        %s517 = scalar_lea.sflag [#allocation17], %s516
        %s518 = sand.u32 %s270, 1
        %s519 = smul.addr %s518, 32
        %s520 = scalar_lea.vmem [#allocation16], %s519
        %v522 = vld [vmem:[%s430] sm:$0xff]
        %v523 = vpack.c.bf16 %v522, %v522
        %v524 = vld [vmem:[%s440] sm:$0xff]
        %v525 = vpack.c.bf16 %v524, %v524
        %v526 = vld [vmem:[%s450] sm:$0xff]
        %v527 = vpack.c.bf16 %v526, %v526
        %v528 = vld [vmem:[#allocation9] sm:$0xf]
        %v529 = vld [vmem:[#allocation9 + $0x4] sm:$0xf]
        %v530 = vld [vmem:[#allocation9 + $0x8] sm:$0xf]
        %v531 = vld [vmem:[#allocation9 + $0xc] sm:$0xf]
        %v536 = vunpack.c.l.b16 %v528
        %v537 = vunpack.c.l.b16 %v529
        %v538 = vunpack.c.l.b16 %v530
        %v539 = vunpack.c.l.b16 %v531
        %v540 = vpack.c.b16 %v537, %v536
        %v541 = vpack.c.b16 %v539, %v538
        %vm544 = vcmask 261120
        %v546 = vsel %vm544, %v523, 0
        %548 = vmatpush.bf16.msra.mxu0 0
        %549 = vmatpush.bf16.msra.mxu0 0
        %550 = vmatpush.bf16.msra.mxu0 0
        %551 = vmatpush.bf16.msra.mxu0 0
        %552 = vmatpush.bf16.msra.mxu0 0
        %553 = vmatpush.bf16.msra.mxu0 0
        %554 = vmatpush.bf16.msra.mxu0 %v541
        %555 = vmatpush.bf16.msra.mxu0 %v540
        %556 = vmatmul.bf16.gmra.mxu0 %v546
        %v557 = vpop.f32.mrf.mxu0
        %v558 = vadd.f32 0.0, %v557
        %v559 = vpop.f32.mrf.mxu0
        %560 = vdwg.mxu0
        %v561 = vmul.f32 %v558, 0.17677669
        %v562 = vld [vmem:[#allocation11] sm:$0xf]
        %v563 = vld [vmem:[#allocation11 + $0x4] sm:$0xf]
        %v564 = vld [vmem:[#allocation11 + $0x8] sm:$0xf]
        %v565 = vld [vmem:[#allocation11 + $0xc] sm:$0xf]
        %v570 = vunpack.c.l.b16 %v562
        %v571 = vunpack.c.l.b16 %v563
        %v572 = vunpack.c.l.b16 %v564
        %v573 = vunpack.c.l.b16 %v565
        %v574 = vpack.c.b16 %v571, %v570
        %v575 = vpack.c.b16 %v573, %v572
        %v579 = vsel %vm544, %v525, 0
        %581 = vmatpush.bf16.msra.mxu0 0
        %582 = vmatpush.bf16.msra.mxu0 0
        %583 = vmatpush.bf16.msra.mxu0 0
        %584 = vmatpush.bf16.msra.mxu0 0
        %585 = vmatpush.bf16.msra.mxu0 0
        %586 = vmatpush.bf16.msra.mxu0 0
        %587 = vmatpush.bf16.msra.mxu0 %v575
        %588 = vmatpush.bf16.msra.mxu0 %v574
        %589 = vmatmul.bf16.gmra.mxu0 %v579
        %v590 = vpop.f32.mrf.mxu0
        %v591 = vadd.f32 0.0, %v590
        %v592 = vpop.f32.mrf.mxu0
        %593 = vdwg.mxu0
        %v594 = vld [vmem:[#allocation12] sm:$0xf]
        %v595 = vld [vmem:[#allocation12 + $0x4] sm:$0xf]
        %v596 = vld [vmem:[#allocation12 + $0x8] sm:$0xf]
        %v597 = vld [vmem:[#allocation12 + $0xc] sm:$0xf]
        %v602 = vunpack.c.l.b16 %v594
        %v603 = vunpack.c.l.b16 %v595
        %v604 = vunpack.c.l.b16 %v596
        %v605 = vunpack.c.l.b16 %v597
        %v606 = vpack.c.b16 %v603, %v602
        %v607 = vpack.c.b16 %v605, %v604
        %v611 = vsel %vm544, %v527, 0
        %613 = vmatpush.bf16.msra.mxu0 0
        %614 = vmatpush.bf16.msra.mxu0 0
        %615 = vmatpush.bf16.msra.mxu0 0
        %616 = vmatpush.bf16.msra.mxu0 0
        %617 = vmatpush.bf16.msra.mxu0 0
        %618 = vmatpush.bf16.msra.mxu0 0
        %619 = vmatpush.bf16.msra.mxu0 %v607
        %620 = vmatpush.bf16.msra.mxu0 %v606
        %621 = vmatmul.bf16.gmra.mxu0 %v611
        %v622 = vpop.f32.mrf.mxu0
        %v623 = vadd.f32 0.0, %v622
        %v624 = vpop.f32.mrf.mxu0
        %625 = vdwg.mxu0
        %v626 = vpack.c.bf16 %v561, %v561
        %v627 = vpack.c.bf16 %v591, %v591
        %v628 = vpack.c.bf16 %v623, %v623
        %v629 = vld [vmem:[#allocation14] sm:$0xf]
        %v630 = vld [vmem:[#allocation14 + $0x4] sm:$0xf]
        %v631 = vld [vmem:[#allocation14 + $0x8] sm:$0xf]
        %v632 = vld [vmem:[#allocation14 + $0xc] sm:$0xf]
        %633 = vst.msk [vmem:[#allocation2] sm:$0xff] %vm544, 0.0
        %vm634 = vcmask 64512
        %v636 = vsel %vm634, %v626, 0
        %v639 = vsel %vm634, %v627, 0
        %641 = vmatpush.bf16.xpose.msra.mxu0 0
        %642 = vmatpush.bf16.xpose.msra.mxu0 0
        %643 = vmatpush.bf16.xpose.msra.mxu0 0
        %644 = vmatpush.bf16.xpose.msra.mxu0 0
        %645 = vmatpush.bf16.xpose.msra.mxu0 0
        %646 = vmatpush.bf16.xpose.msra.mxu0 0
        %647 = vmatpush.bf16.xpose.msra.mxu0 0
        %648 = vmatpush.bf16.xpose.msra.mxu0 %v639
        %649 = vmatmul.bf16.gmra.mxu0 %v636
        %v650 = vpop.f32.mrf.mxu0
        %v651 = vadd.f32 0.0, %v650
        %v652 = vpop.f32.mrf.mxu0
        %653 = vdwg.mxu0
        %v654 = vsel %vm634, %v651, -inf
        %655 = vmax.xlane.f32.xlu0 %v654
        %v656 = vpop.xlane.xlu0 %655
        %v657 = vsub.f32 %v651, %v656
        %v658 = vmul.f32 %v657, 1.442695
        %v659 = vpow.pop %v658
        %v660 = vsel %vm634, %v659, 0.0
        %661 = vadd.xlane.f32.xlu0 %v660
        %v662 = vpop.xlane.xlu0 %661
        %v663 = vrcp.pop %v662
        %v664 = vmul.f32 %v659, %v663
        %665 = vst.msk [vmem:[%s520] sm:$0xff] %vm634, %v664
        %v666 = vpack.c.bf16 %v664, %v664
        %v668 = vsel %vm634, %v666, 0
        %vm670 = vcmask 1043456
        %v672 = vsel %vm670, %v628, 0
        %674 = vmatpush.bf16.msra.mxu0 0
        %675 = vmatpush.bf16.msra.mxu0 0
        %676 = vmatpush.bf16.msra.mxu0 0
        %677 = vmatpush.bf16.msra.mxu0 0
        %678 = vmatpush.bf16.msra.mxu0 0
        %679 = vmatpush.bf16.msra.mxu0 0
        %680 = vmatpush.bf16.msra.mxu0 0
        %681 = vmatpush.bf16.msra.mxu0 %v672
        %682 = vmatmul.bf16.gmra.mxu0 %v668
        %v683 = vpop.f32.mrf.mxu0
        %v684 = vadd.f32 0.0, %v683
        %v685 = vpop.f32.mrf.mxu0
        %686 = vdwg.mxu0
        %v687 = vld [vmem:[#allocation2] sm:$0xff]
        %v688 = vpack.c.bf16 %v684, %v684
        %v690 = vsel %vm634, %v688, 0
        %v693 = vsel %vm670, %v629, 0
        %695 = vmatpush.bf16.msra.mxu0 0
        %696 = vmatpush.bf16.msra.mxu0 0
        %697 = vmatpush.bf16.msra.mxu0 0
        %698 = vmatpush.bf16.msra.mxu0 0
        %699 = vmatpush.bf16.msra.mxu0 0
        %700 = vmatpush.bf16.msra.mxu0 0
        %701 = vmatpush.bf16.msra.mxu0 0
        %702 = vmatpush.bf16.msra.mxu0 %v693
        %703 = vmatmul.bf16.gmra.mxu0 %v690
        %v704 = vpop.f32.mrf.mxu0
        %v705 = vadd.f32 0.0, %v704
        %v706 = vpop.f32.mrf.mxu0
        %707 = vdwg.mxu0
        %v708 = vadd.f32 %v687, %v705
        %709 = vst.msk [vmem:[#allocation2] sm:$0xff] %vm544, %v708
        %v711 = vunpack.c.l.b16 %v626
        %v712 = vpack.c.b16 %v711, %v711
        %713 = vrot.lane.b32.xlu0 %v712, 120
        %v714 = vpop.permute.xlu0 %713
        %v716 = vunpack.c.l.b16 %v627
        %v717 = vpack.c.b16 %v716, %v716
        %718 = vrot.lane.b32.xlu0 %v717, 120
        %v719 = vpop.permute.xlu0 %718
        %v721 = vsel %vm634, %v714, 0
        %v724 = vsel %vm634, %v719, 0
        %726 = vmatpush.bf16.xpose.msra.mxu0 0
        %727 = vmatpush.bf16.xpose.msra.mxu0 0
        %728 = vmatpush.bf16.xpose.msra.mxu0 0
        %729 = vmatpush.bf16.xpose.msra.mxu0 0
        %730 = vmatpush.bf16.xpose.msra.mxu0 0
        %731 = vmatpush.bf16.xpose.msra.mxu0 0
        %732 = vmatpush.bf16.xpose.msra.mxu0 0
        %733 = vmatpush.bf16.xpose.msra.mxu0 %v724
        %734 = vmatmul.bf16.gmra.mxu0 %v721
        %v735 = vpop.f32.mrf.mxu0
        %v736 = vadd.f32 0.0, %v735
        %v737 = vpop.f32.mrf.mxu0
        %738 = vdwg.mxu0
        %v739 = vsel %vm634, %v736, -inf
        %740 = vmax.xlane.f32.xlu0 %v739
        %v741 = vpop.xlane.xlu0 %740
        %v742 = vsub.f32 %v736, %v741
        %v743 = vmul.f32 %v742, 1.442695
        %v744 = vpow.pop %v743
        %v745 = vsel %vm634, %v744, 0.0
        %746 = vadd.xlane.f32.xlu0 %v745
        %v747 = vpop.xlane.xlu0 %746
        %v748 = vrcp.pop %v747
        %v749 = vmul.f32 %v744, %v748
        %s750 = scalar_lea.vmem %s520, 8 [#allocation16]
        %751 = vst.msk [vmem:[%s750] sm:$0xff] %vm634, %v749
        %v752 = vpack.c.bf16 %v749, %v749
        %v754 = vunpack.c.l.b16 %v628
        %v755 = vpack.c.b16 %v754, %v754
        %756 = vrot.lane.b32.xlu0 %v755, 120
        %v757 = vpop.permute.xlu0 %756
        %v759 = vsel %vm634, %v752, 0
        %v762 = vsel %vm670, %v757, 0
        %764 = vmatpush.bf16.msra.mxu0 0
        %765 = vmatpush.bf16.msra.mxu0 0
        %766 = vmatpush.bf16.msra.mxu0 0
        %767 = vmatpush.bf16.msra.mxu0 0
        %768 = vmatpush.bf16.msra.mxu0 0
        %769 = vmatpush.bf16.msra.mxu0 0
        %770 = vmatpush.bf16.msra.mxu0 0
        %771 = vmatpush.bf16.msra.mxu0 %v762
        %772 = vmatmul.bf16.gmra.mxu0 %v759
        %v773 = vpop.f32.mrf.mxu0
        %v774 = vadd.f32 0.0, %v773
        %v775 = vpop.f32.mrf.mxu0
        %776 = vdwg.mxu0
        %v777 = vld [vmem:[#allocation2] sm:$0xff]
        %v778 = vpack.c.bf16 %v774, %v774
        %v780 = vsel %vm634, %v778, 0
        %v783 = vsel %vm670, %v630, 0
        %785 = vmatpush.bf16.msra.mxu0 0
        %786 = vmatpush.bf16.msra.mxu0 0
        %787 = vmatpush.bf16.msra.mxu0 0
        %788 = vmatpush.bf16.msra.mxu0 0
        %789 = vmatpush.bf16.msra.mxu0 0
        %790 = vmatpush.bf16.msra.mxu0 0
        %791 = vmatpush.bf16.msra.mxu0 0
        %792 = vmatpush.bf16.msra.mxu0 %v783
        %793 = vmatmul.bf16.gmra.mxu0 %v780
        %v794 = vpop.f32.mrf.mxu0
        %v795 = vadd.f32 0.0, %v794
        %v796 = vpop.f32.mrf.mxu0
        %797 = vdwg.mxu0
        %v798 = vadd.f32 %v777, %v795
        %799 = vst.msk [vmem:[#allocation2] sm:$0xff] %vm544, %v798
        %800 = vrot.lane.b32.xlu0 %v712, 112
        %v801 = vpop.permute.xlu0 %800
        %802 = vrot.lane.b32.xlu0 %v717, 112
        %v803 = vpop.permute.xlu0 %802
        %v805 = vsel %vm634, %v801, 0
        %v808 = vsel %vm634, %v803, 0
        %810 = vmatpush.bf16.xpose.msra.mxu0 0
        %811 = vmatpush.bf16.xpose.msra.mxu0 0
        %812 = vmatpush.bf16.xpose.msra.mxu0 0
        %813 = vmatpush.bf16.xpose.msra.mxu0 0
        %814 = vmatpush.bf16.xpose.msra.mxu0 0
        %815 = vmatpush.bf16.xpose.msra.mxu0 0
        %816 = vmatpush.bf16.xpose.msra.mxu0 0
        %817 = vmatpush.bf16.xpose.msra.mxu0 %v808
        %818 = vmatmul.bf16.gmra.mxu0 %v805
        %v819 = vpop.f32.mrf.mxu0
        %v820 = vadd.f32 0.0, %v819
        %v821 = vpop.f32.mrf.mxu0
        %822 = vdwg.mxu0
        %v823 = vsel %vm634, %v820, -inf
        %824 = vmax.xlane.f32.xlu0 %v823
        %v825 = vpop.xlane.xlu0 %824
        %v826 = vsub.f32 %v820, %v825
        %v827 = vmul.f32 %v826, 1.442695
        %v828 = vpow.pop %v827
        %v829 = vsel %vm634, %v828, 0.0
        %830 = vadd.xlane.f32.xlu0 %v829
        %v831 = vpop.xlane.xlu0 %830
        %v832 = vrcp.pop %v831
        %v833 = vmul.f32 %v828, %v832
        %s834 = scalar_lea.vmem %s520, 16 [#allocation16]
        %835 = vst.msk [vmem:[%s834] sm:$0xff] %vm634, %v833
        %v836 = vpack.c.bf16 %v833, %v833
        %837 = vrot.lane.b32.xlu0 %v755, 112
        %v838 = vpop.permute.xlu0 %837
        %v840 = vsel %vm634, %v836, 0
        %v843 = vsel %vm670, %v838, 0
        %845 = vmatpush.bf16.msra.mxu0 0
        %846 = vmatpush.bf16.msra.mxu0 0
        %847 = vmatpush.bf16.msra.mxu0 0
        %848 = vmatpush.bf16.msra.mxu0 0
        %849 = vmatpush.bf16.msra.mxu0 0
        %850 = vmatpush.bf16.msra.mxu0 0
        %851 = vmatpush.bf16.msra.mxu0 0
        %852 = vmatpush.bf16.msra.mxu0 %v843
        %853 = vmatmul.bf16.gmra.mxu0 %v840
        %v854 = vpop.f32.mrf.mxu0
        %v855 = vadd.f32 0.0, %v854
        %v856 = vpop.f32.mrf.mxu0
        %857 = vdwg.mxu0
        %v858 = vld [vmem:[#allocation2] sm:$0xff]
        %v859 = vpack.c.bf16 %v855, %v855
        %v861 = vsel %vm634, %v859, 0
        %v864 = vsel %vm670, %v631, 0
        %866 = vmatpush.bf16.msra.mxu0 0
        %867 = vmatpush.bf16.msra.mxu0 0
        %868 = vmatpush.bf16.msra.mxu0 0
        %869 = vmatpush.bf16.msra.mxu0 0
        %870 = vmatpush.bf16.msra.mxu0 0
        %871 = vmatpush.bf16.msra.mxu0 0
        %872 = vmatpush.bf16.msra.mxu0 0
        %873 = vmatpush.bf16.msra.mxu0 %v864
        %874 = vmatmul.bf16.gmra.mxu0 %v861
        %v875 = vpop.f32.mrf.mxu0
        %v876 = vadd.f32 0.0, %v875
        %v877 = vpop.f32.mrf.mxu0
        %878 = vdwg.mxu0
        %v879 = vadd.f32 %v858, %v876
        %880 = vst.msk [vmem:[#allocation2] sm:$0xff] %vm544, %v879
        %881 = vrot.lane.b32.xlu0 %v712, 104
        %v882 = vpop.permute.xlu0 %881
        %883 = vrot.lane.b32.xlu0 %v717, 104
        %v884 = vpop.permute.xlu0 %883
        %v886 = vsel %vm634, %v882, 0
        %v889 = vsel %vm634, %v884, 0
        %891 = vmatpush.bf16.xpose.msra.mxu0 0
        %892 = vmatpush.bf16.xpose.msra.mxu0 0
        %893 = vmatpush.bf16.xpose.msra.mxu0 0
        %894 = vmatpush.bf16.xpose.msra.mxu0 0
        %895 = vmatpush.bf16.xpose.msra.mxu0 0
        %896 = vmatpush.bf16.xpose.msra.mxu0 0
        %897 = vmatpush.bf16.xpose.msra.mxu0 0
        %898 = vmatpush.bf16.xpose.msra.mxu0 %v889
        %899 = vmatmul.bf16.gmra.mxu0 %v886
        %v900 = vpop.f32.mrf.mxu0
        %v901 = vadd.f32 0.0, %v900
        %v902 = vpop.f32.mrf.mxu0
        %903 = vdwg.mxu0
        %v904 = vsel %vm634, %v901, -inf
        %905 = vmax.xlane.f32.xlu0 %v904
        %v906 = vpop.xlane.xlu0 %905
        %v907 = vsub.f32 %v901, %v906
        %v908 = vmul.f32 %v907, 1.442695
        %v909 = vpow.pop %v908
        %v910 = vsel %vm634, %v909, 0.0
        %911 = vadd.xlane.f32.xlu0 %v910
        %v912 = vpop.xlane.xlu0 %911
        %v913 = vrcp.pop %v912
        %v914 = vmul.f32 %v909, %v913
        %s915 = scalar_lea.vmem %s520, 24 [#allocation16]
        %916 = vst.msk [vmem:[%s915] sm:$0xff] %vm634, %v914
        %v917 = vpack.c.bf16 %v914, %v914
        %918 = vrot.lane.b32.xlu0 %v755, 104
        %v919 = vpop.permute.xlu0 %918
        %v921 = vsel %vm634, %v917, 0
        %v924 = vsel %vm670, %v919, 0
        %926 = vmatpush.bf16.msra.mxu0 0
        %927 = vmatpush.bf16.msra.mxu0 0
        %928 = vmatpush.bf16.msra.mxu0 0
        %929 = vmatpush.bf16.msra.mxu0 0
        %930 = vmatpush.bf16.msra.mxu0 0
        %931 = vmatpush.bf16.msra.mxu0 0
        %932 = vmatpush.bf16.msra.mxu0 0
        %933 = vmatpush.bf16.msra.mxu0 %v924
        %934 = vmatmul.bf16.gmra.mxu0 %v921
        %v935 = vpop.f32.mrf.mxu0
        %v936 = vadd.f32 0.0, %v935
        %v937 = vpop.f32.mrf.mxu0
        %938 = vdwg.mxu0
        %v939 = vld [vmem:[#allocation2] sm:$0xff]
        %v940 = vpack.c.bf16 %v936, %v936
        %v942 = vsel %vm634, %v940, 0
        %v945 = vsel %vm670, %v632, 0
        %947 = vmatpush.bf16.msra.mxu0 0
        %948 = vmatpush.bf16.msra.mxu0 0
        %949 = vmatpush.bf16.msra.mxu0 0
        %950 = vmatpush.bf16.msra.mxu0 0
        %951 = vmatpush.bf16.msra.mxu0 0
        %952 = vmatpush.bf16.msra.mxu0 0
        %953 = vmatpush.bf16.msra.mxu0 0
        %954 = vmatpush.bf16.msra.mxu0 %v945
        %955 = vmatmul.bf16.gmra.mxu0 %v942
        %v956 = vpop.f32.mrf.mxu0
        %v957 = vadd.f32 0.0, %v956
        %v958 = vpop.f32.mrf.mxu0
        %959 = vdwg.mxu0
        %v960 = vadd.f32 %v939, %v957
        %961 = vst.msk [vmem:[#allocation2] sm:$0xff] %vm544, %v960
        %v962 = vld [vmem:[#allocation2] sm:$0xff]
        %v963 = vld [vmem:[%s7] sm:$0x1]
        %v965 = vperm.slane %v963, 0
        %v967 = vadd.f32 %v962, %v965
        %968 = vst.msk [vmem:[%s513] sm:$0xff] %vm544, %v967
        %s969 = sand.u32 %s242, 1
        %s970 = scalar_lea.sflag [#allocation5], %s969
        %s971 = sand.u32 %s242, 1
        %s972 = smul.addr %s971, 8
        %s973 = scalar_lea.vmem [#allocation15], %s972
        %s974 = sand.u32 %s270, 1
        %s975 = scalar_lea.sflag [#allocation17], %s974
        %s976 = sand.u32 %s270, 1
        %s977 = smul.addr %s976, 32
        %s978 = scalar_lea.vmem [#allocation16], %s977
        // Predicated region
        $region81: #{tpu_custom_call.1} parent=51 // pred_check
          %p979 = pneg %p252
        $region82: #{tpu_custom_call.1} parent=51 // pred_check_branch
          %981 = sbr.rel (%p979) target = $region84
        $region83: #{tpu_custom_call.1} parent=51 // pred_region
          %983 = vsyncadd %s970, 0
          %s984 = sadd.s32 %s40, %s39
          %s985 = smul.addr %s984, 8
          %s986 = scalar_lea.hbm %s8, %s985
          %s988 = sshll.u32 %s973, 4
          %s989 = int_to_ptr.vmem [resolvable:$true] %s988
          %s990 = sshll.u32 %s986, 4
          %s991 = int_to_ptr.hbm [resolvable:$true] %s990
          %993 = dma.vmem_to_hbm [thread:$0]  %s989, 128, %s991, %s970
        $region84: #{tpu_custom_call.1} parent=51 // pred_fallthru
          _
        // Predicated region
        $region85: #{tpu_custom_call.1} parent=51 // pred_check
          %p994 = pneg %p280
        $region86: #{tpu_custom_call.1} parent=51 // pred_check_branch
          %996 = sbr.rel (%p994) target = $region88
        $region87: #{tpu_custom_call.1} parent=51 // pred_region
          %998 = vsyncadd %s975, 0
          %s999 = sadd.s32 %s40, %s39
          %s1000 = smul.addr %s999, 8
          %s1001 = scalar_lea.hbm %s9, %s1000
          %s1002 = sshll.u32 %s978, 4
          %s1003 = int_to_ptr.vmem [resolvable:$true] %s1002
          %s1004 = sshll.u32 %s1001, 4
          %s1005 = int_to_ptr.hbm [resolvable:$true] %s1004
          %1010 = dma.vmem_to_hbm [thread:$0]  %s1003, 512, %s1005, %s975, 128, 256, 8
        $region88: #{tpu_custom_call.1} parent=51 // pred_fallthru
          _
      $region52: #{tpu_custom_call.1} parent=5 // pred_fallthru
        _
      %p1011 = scmp.le.s32.totalorder 2, %s30
      // Predicated region
      $region89: #{tpu_custom_call.1} parent=5 // pred_check
        %p1012 = pneg %p1011
      $region90: #{tpu_custom_call.1} parent=5 // pred_check_branch
        %1014 = sbr.rel (%p1012) target = $region92
      $region91: #{tpu_custom_call.1} parent=5 // pred_region
        %s1015 = ssub.s32 %s30, 2
        // Predicated region
        $region93: #{tpu_custom_call.1} parent=91 // pred_check
          %p1016 = pneg %p258
        $region94: #{tpu_custom_call.1} parent=91 // pred_check_branch
          %1018 = sbr.rel (%p1016) target = $region96
        $region95: #{tpu_custom_call.1} parent=91 // pred_region
          %s1019 = sand.u32 %s243, 1
          %s1020 = scalar_lea.sflag [#allocation5], %s1019
          %s1021 = sand.u32 %s243, 1
          %s1022 = smul.addr %s1021, 8
          %s1023 = scalar_lea.vmem [#allocation15], %s1022
          %1025 = dma.done %s1020, 128
        $region96: #{tpu_custom_call.1} parent=91 // pred_fallthru
          _
        // Predicated region
        $region97: #{tpu_custom_call.1} parent=91 // pred_check
          %p1026 = pneg %p286
        $region98: #{tpu_custom_call.1} parent=91 // pred_check_branch
          %1028 = sbr.rel (%p1026) target = $region100
        $region99: #{tpu_custom_call.1} parent=91 // pred_region
          %s1029 = sand.u32 %s271, 1
          %s1030 = scalar_lea.sflag [#allocation17], %s1029
          %s1031 = sand.u32 %s271, 1
          %s1032 = smul.addr %s1031, 32
          %s1033 = scalar_lea.vmem [#allocation16], %s1032
          %1035 = dma.done %s1030, 512
        $region100: #{tpu_custom_call.1} parent=91 // pred_fallthru
          _
      $region92: #{tpu_custom_call.1} parent=5 // pred_fallthru
        _
    $region6: #{tpu_custom_call.1} parent=1 // loop_footer
      %s34 = sadd.s32 1, %s30
    $region7: #{tpu_custom_call.1} parent=1 // loop_footer_branch
      %29 = sbr.rel target = $region3
    $region8: #{tpu_custom_call.1} parent=1 // loop_exit
      _
    %1036 = vsyncpa [#allocation4], 1
    %s1037 = scalar_lea.sflag [#allocation4], 1
    %1038 = vsyncpa %s1037, 1
    %1039 = vsyncpa [#allocation7], 1
    %s1040 = scalar_lea.sflag [#allocation7], 1
    %1041 = vsyncpa %s1040, 1
    %1042 = vsyncpa [#allocation10], 1
    %1043 = vsyncpa [#allocation13], 1
    %1044 = vsyncpa [#allocation5], 1
    %s1045 = scalar_lea.sflag [#allocation5], 1
    %1046 = vsyncpa %s1045, 1
    %1047 = vsyncpa [#allocation17], 1
    %s1048 = scalar_lea.sflag [#allocation17], 1
    %1049 = vsyncpa %s1048, 1

</llo_original>
